<compile_context>
chip_gen: v7x
topology: tpu7x:2x2x1
jax: 0.10.0
libtpu: 0.0.40
codegen_flags: <defaults>
</compile_context>

<pallas_src>
import jax
import jax.numpy as jnp
from jax.experimental import pallas as pl
from jax.experimental.pallas import tpu as pltpu


def _round8(n):
    return -(-n // 8) * 8


def _build_pack(segments):
    """Concat 2-D arrays along axis 0, padding each segment to a multiple of 8
    rows so every in-kernel view starts on a sublane-tile boundary.
    Returns (packed_array, {name: row_offset})."""
    rows, offsets, off = [], {}, 0
    for name, arr in segments:
        offsets[name] = off
        r = _round8(arr.shape[0])
        rows.append(jnp.pad(arr, ((0, r - arr.shape[0]), (0, 0))))
        off += r
    return jnp.concatenate(rows, axis=0), offsets


def textrnn_forward(inputs, aspect, params):
    """Pallas implementation of TextRNN.forward (eval mode).

    inputs: (L, 1, input_size) float32  (time-major, batch=1, like nn.LSTM default)
    aspect: (1,) int32 -- its attention contribution is constant over time and
            cancels exactly in softmax(dim=0), so it does not enter the kernel.
    returns: (decoded (1, output_size), (None, None))
    """
    L, B, I = inputs.shape
    assert B == 1
    H = params["w_hh"].shape[1]
    O = params["w_dec"].shape[0]
    del aspect  # softmax-invariant contribution; dropped exactly.

    x = inputs[:, 0, :]                                        # (L, I)

    def perm_gates(a):  # columns [i|f|g|o] -> [i|f|o|g]
        return jnp.concatenate([a[:, :2 * H], a[:, 3 * H:], a[:, 2 * H:3 * H]], axis=1)

    # ---- operand packing (3 DMAs total instead of 18) ----
    wih_t = perm_gates(params["w_ih"].T)                       # (I, 4H)
    whh_t = perm_gates(params["w_hh"].T)                       # (H, 4H)
    b_lstm = perm_gates((params["b_ih"] + params["b_hh"]).reshape(1, 4 * H))

    wh_t = params["wh_w"].T                                    # (H, H)
    bh = params["wh_b"].reshape(1, H)
    watt_h = params["watt_w"][:, :H].reshape(1, H)             # attention row acting on W_h(output)
    wpx_t = jnp.concatenate([params["wp_w"].T, params["wx_w"].T], axis=0)   # (2H, H)
    bpx = (params["wp_b"] + params["wx_b"]).reshape(1, H)
    wdec = params["w_dec"]                                     # (O, H), row-per-class for VPU reduce
    bdec_col = jnp.pad(params["b_dec"].reshape(O, 1), ((0, 0), (0, H - 1)))  # (O, H), lane 0 = bias

    pack_a, offa = _build_pack([("wih", wih_t), ("whh", whh_t), ("b", b_lstm)])      # (., 4H)
    pack_b, offb = _build_pack([("wh", wh_t), ("bh", bh), ("watt", watt_h),
                                ("wpx", wpx_t), ("bpx", bpx),
                                ("wdec", wdec), ("bdec", bdec_col)])                 # (., H)

    def kernel(x_ref, pa_ref, pb_ref, out_ref):
        f32 = jnp.float32
        # --- LSTM weights: static views into the packed block ---
        wih = pa_ref[pl.ds(offa["wih"], I), :]                 # (I, 4H)
        whh = pa_ref[pl.ds(offa["whh"], H), :]                 # (H, 4H)
        blstm = pa_ref[pl.ds(offa["b"], 1), :]                 # (1, 4H)

        # Hoisted input projection: one (L,I)@(I,4H) matmul off the recurrence.
        # (L,4H) = (8,128) f32 == exactly one vreg; stays a value (never stored).
        xg = jnp.dot(x_ref[...], wih, preferred_element_type=f32) + blstm

        h = jnp.zeros((1, H), f32)
        c = jnp.zeros((1, H), f32)
        output = jnp.zeros((L, H), f32)                        # vreg-resident h sequence
        row_ids = jax.lax.broadcasted_iota(jnp.int32, (L, H), 0)

        # Static L=8 loop: static sublane slices of xg; same RHS value `whh`
        # reused by all 8 serial recurrence matmuls.
        for t in range(L):
            g_all = xg[t:t + 1, :] + jnp.dot(h, whh, preferred_element_type=f32)  # (1,4H) [i|f|o|g]
            sg = jax.nn.sigmoid(g_all[:, :3 * H])              # sigmoid over live i,f,o lanes only
            gg = jnp.tanh(g_all[:, 3 * H:])                    # tanh over the g lanes only
            i_g = sg[:, :H]
            f_g = sg[:, H:2 * H]
            o_g = sg[:, 2 * H:3 * H]
            c = f_g * c + i_g * gg
            h = o_g * jnp.tanh(c)
            output = jnp.where(row_ids == t, h, output)        # static row select, no VMEM store
        h_final = h

        # --- attention / epilogue weights (loaded after the recurrence) ---
        wh_w = pb_ref[pl.ds(offb["wh"], H), :]                 # (H, H)
        bh_r = pb_ref[pl.ds(offb["bh"], 1), :]                 # (1, H)
        watt = pb_ref[pl.ds(offb["watt"], 1), :]               # (1, H)
        wpx = pb_ref[pl.ds(offb["wpx"], 2 * H), :]             # (2H, H)
        bpx_r = pb_ref[pl.ds(offb["bpx"], 1), :]               # (1, H)
        wdec_m = pb_ref[pl.ds(offb["wdec"], O), :]             # (O, H)
        bdec_r = pb_ref[pl.ds(offb["bdec"], O), :][:, 0:1]     # (O, 1)

        # Attention scores: aspect / global-bias terms are time-constant -> cancel in softmax.
        th = jnp.tanh(jnp.dot(output, wh_w, preferred_element_type=f32) + bh_r)  # (L, H)
        scores = jnp.sum(th * watt, axis=1, keepdims=True)                       # (L, 1)
        m = jnp.max(scores, axis=0, keepdims=True)
        e = jnp.exp(scores - m)
        attn = e / jnp.sum(e, axis=0, keepdims=True)                             # (L, 1)
        r = jnp.sum(attn * output, axis=0, keepdims=True)                        # (1, H)

        # Fused W_p / W_x projection: one (1,2H)@(2H,H) matmul, pre-summed bias.
        rh = jnp.concatenate([r, h_final], axis=1)                               # (1, 2H)
        r2 = jnp.tanh(jnp.dot(rh, wpx, preferred_element_type=f32) + bpx_r)      # (1, H)
        # TODO(synk): nn.Dropout(0.3) is applied as identity (inference/eval mode).

        # Decoder (N=O=4): VPU multiply + lane reduce instead of a degenerate MXU matmul.
        out_ref[...] = (jnp.sum(r2 * wdec_m, axis=1, keepdims=True)
                        + bdec_r).astype(out_ref.dtype)                          # (O, 1)

    decoded_col = pl.pallas_call(
        kernel,
        out_shape=jax.ShapeDtypeStruct((O, 1), jnp.float32),
        in_specs=[pl.BlockSpec(memory_space=pltpu.MemorySpace.VMEM)] * 3,
        out_specs=pl.BlockSpec(memory_space=pltpu.MemorySpace.VMEM),
    )(x, pack_a, pack_b)
    return decoded_col.reshape(1, O), (None, None)


def reference_forward(inputs, aspect, params):
    """Pure-JAX reference matching PyTorch TextRNN.forward semantics (eval mode)."""
    L, _, I = inputs.shape
    H = params["w_hh"].shape[1]
    x = inputs[:, 0, :]
    h = jnp.zeros((1, H), jnp.float32)
    c = jnp.zeros((1, H), jnp.float32)
    outs = []
    for t in range(L):
        gates = (x[t:t + 1] @ params["w_ih"].T + h @ params["w_hh"].T
                 + params["b_ih"] + params["b_hh"])
        i = jax.nn.sigmoid(gates[:, 0:H])
        f = jax.nn.sigmoid(gates[:, H:2 * H])
        g = jnp.tanh(gates[:, 2 * H:3 * H])
        o = jax.nn.sigmoid(gates[:, 3 * H:4 * H])
        c = f * c + i * g
        h = o * jnp.tanh(c)
        outs.append(h)
    output = jnp.concatenate(outs, axis=0)                     # (L, H)
    hidden = h                                                 # (1, H)
    asp = params["ae_weight"][aspect].reshape(1, -1)
    asp_e = jnp.broadcast_to(asp, (L, I))
    M = jnp.tanh(jnp.concatenate(
        [output @ params["wh_w"].T + params["wh_b"],
         asp_e @ params["wv_w"].T + params["wv_b"]], axis=1))
    scores = M @ params["watt_w"].T + params["watt_b"]         # (L, 1)
    weights = jax.nn.softmax(scores, axis=0).T                 # (1, L)
    r = weights @ output                                       # (1, H)
    r = jnp.tanh(r @ params["wp_w"].T + params["wp_b"]
                 + hidden @ params["wx_w"].T + params["wx_b"])
    decoded = r @ params["w_dec"].T + params["b_dec"]
    return decoded


def init_params(key, input_size, hidden_size, output_size, aspect_size):
    ks = jax.random.split(key, 17)

    def lin(kw, kb, out_f, in_f):
        lim = 1.0 / jnp.sqrt(jnp.float32(in_f))
        w = jax.random.uniform(kw, (out_f, in_f), jnp.float32, -lim, lim)
        b = jax.random.uniform(kb, (out_f,), jnp.float32, -lim, lim)
        return w, b

    s = 1.0 / jnp.sqrt(jnp.float32(hidden_size))
    wh_w, wh_b = lin(ks[5], ks[6], hidden_size, hidden_size)
    wv_w, wv_b = lin(ks[7], ks[8], input_size, input_size)
    watt_w, watt_b = lin(ks[9], ks[10], 1, hidden_size + input_size)
    wp_w, wp_b = lin(ks[11], ks[12], hidden_size, hidden_size)
    wx_w, wx_b = lin(ks[13], ks[14], hidden_size, hidden_size)
    wdec_w, wdec_b = lin(ks[15], ks[16], output_size, hidden_size)
    return {
        "ae_weight": jax.random.normal(ks[0], (aspect_size, input_size), jnp.float32),
        "w_ih": jax.random.uniform(ks[1], (4 * hidden_size, input_size),
                                   jnp.float32, -s, s),
        "w_hh": jax.random.uniform(ks[2], (4 * hidden_size, hidden_size),
                                   jnp.float32, -s, s),
        "b_ih": jax.random.uniform(ks[3], (4 * hidden_size,), jnp.float32, -s, s),
        "b_hh": jax.random.uniform(ks[4], (4 * hidden_size,), jnp.float32, -s, s),
        "wh_w": wh_w, "wh_b": wh_b,
        "wv_w": wv_w, "wv_b": wv_b,
        "watt_w": watt_w, "watt_b": watt_b,
        "wp_w": wp_w, "wp_b": wp_b,
        "wx_w": wx_w, "wx_b": wx_b,
        "w_dec": wdec_w, "b_dec": wdec_b,
    }


if __name__ == "__main__":
    input_size, hidden_size, output_size, aspect_size = 16, 32, 4, 5
    seq_len = 8

    key = jax.random.PRNGKey(0)
    kp, kx = jax.random.split(key)
    params = init_params(kp, input_size, hidden_size, output_size, aspect_size)
    inputs = jax.random.normal(kx, (seq_len, 1, input_size), jnp.float32)
    aspect = jnp.array([2], dtype=jnp.int32)

    out, _ = textrnn_forward(inputs, aspect, params)
    out = jax.block_until_ready(out)

    ref = reference_forward(inputs, aspect, params)
    assert out.shape == (1, output_size), out.shape
    assert jnp.allclose(out, ref, atol=5e-4, rtol=5e-4), (out, ref)
    print("KERNEL_OK")
</pallas_src>

<mosaic_0001>
module attributes {stable_mosaic.version = 11 : i64} {
  func.func @kernel(%arg0: memref<8x16xf32, #tpu.memory_space<vmem>>, %arg1: memref<56x128xf32, #tpu.memory_space<vmem>>, %arg2: memref<136x32xf32, #tpu.memory_space<vmem>>, %arg3: memref<4x1xf32, #tpu.memory_space<vmem>>) attributes {dimension_semantics = [], scalar_prefetch = 0 : i64, scratch_operands = 0 : i64, tpu.core_type = #tpu.core_type<tc>} {
    %c0 = arith.constant 0 : index
    %c0_0 = arith.constant 0 : index
    %0 = vector.load %arg1[%c0, %c0_0] : memref<56x128xf32, #tpu.memory_space<vmem>>, vector<16x128xf32>
    %c16 = arith.constant 16 : index
    %c0_1 = arith.constant 0 : index
    %1 = vector.load %arg1[%c16, %c0_1] : memref<56x128xf32, #tpu.memory_space<vmem>>, vector<32x128xf32>
    %c48 = arith.constant 48 : index
    %c0_2 = arith.constant 0 : index
    %2 = vector.load %arg1[%c48, %c0_2] : memref<56x128xf32, #tpu.memory_space<vmem>>, vector<1x128xf32>
    %c0_3 = arith.constant 0 : index
    %c0_4 = arith.constant 0 : index
    %3 = vector.load %arg0[%c0_3, %c0_4] : memref<8x16xf32, #tpu.memory_space<vmem>>, vector<8x16xf32>
    %cst = arith.constant dense<0.000000e+00> : vector<8x128xf32>
    %4 = tpu.matmul %3, %0, %cst {dimension_numbers = #tpu.dot_dimension_numbers<[1], [0], [0], [1], [0, 0, 1, 1], [], []>} : vector<8x16xf32>, vector<16x128xf32>, vector<8x128xf32> -> vector<8x128xf32>
    %5 = vector.broadcast %2 : vector<1x128xf32> to vector<8x128xf32>
    %6 = arith.addf %4, %5 : vector<8x128xf32>
    %cst_5 = arith.constant 0.000000e+00 : f32
    %7 = vector.broadcast %cst_5 : f32 to vector<1x32xf32>
    %cst_6 = arith.constant 0.000000e+00 : f32
    %8 = vector.broadcast %cst_6 : f32 to vector<1x32xf32>
    %cst_7 = arith.constant 0.000000e+00 : f32
    %9 = vector.broadcast %cst_7 : f32 to vector<8x32xf32>
    %10 = tpu.iota {dimensions = array<i32: 0>} : vector<8x32xi32>
    %11 = vector.extract_strided_slice %6 {offsets = [0, 0], sizes = [1, 128], strides = [1, 1]} : vector<8x128xf32> to vector<1x128xf32>
    %cst_8 = arith.constant dense<0.000000e+00> : vector<1x128xf32>
    %12 = tpu.matmul %7, %1, %cst_8 {dimension_numbers = #tpu.dot_dimension_numbers<[1], [0], [0], [1], [0, 0, 1, 1], [], []>} : vector<1x32xf32>, vector<32x128xf32>, vector<1x128xf32> -> vector<1x128xf32>
    %13 = arith.addf %11, %12 : vector<1x128xf32>
    %14 = vector.extract_strided_slice %13 {offsets = [0, 0], sizes = [1, 96], strides = [1, 1]} : vector<1x128xf32> to vector<1x96xf32>
    %15 = arith.negf %14 : vector<1x96xf32>
    %16 = math.exp %15 : vector<1x96xf32>
    %cst_9 = arith.constant 1.000000e+00 : f32
    %17 = vector.broadcast %cst_9 : f32 to vector<1x96xf32>
    %18 = arith.addf %17, %16 : vector<1x96xf32>
    %19 = arith.divf %17, %18 : vector<1x96xf32>
    %20 = vector.extract_strided_slice %13 {offsets = [0, 96], sizes = [1, 32], strides = [1, 1]} : vector<1x128xf32> to vector<1x32xf32>
    %21 = math.tanh %20 : vector<1x32xf32>
    %22 = vector.extract_strided_slice %19 {offsets = [0, 0], sizes = [1, 32], strides = [1, 1]} : vector<1x96xf32> to vector<1x32xf32>
    %23 = vector.extract_strided_slice %19 {offsets = [0, 32], sizes = [1, 32], strides = [1, 1]} : vector<1x96xf32> to vector<1x32xf32>
    %24 = vector.extract_strided_slice %19 {offsets = [0, 64], sizes = [1, 32], strides = [1, 1]} : vector<1x96xf32> to vector<1x32xf32>
    %25 = arith.mulf %23, %8 : vector<1x32xf32>
    %26 = arith.mulf %22, %21 : vector<1x32xf32>
    %27 = arith.addf %25, %26 : vector<1x32xf32>
    %28 = math.tanh %27 : vector<1x32xf32>
    %29 = arith.mulf %24, %28 : vector<1x32xf32>
    %c0_i32 = arith.constant 0 : i32
    %30 = vector.broadcast %c0_i32 : i32 to vector<8x32xi32>
    %31 = arith.cmpi eq, %10, %30 : vector<8x32xi32>
    %32 = vector.shape_cast %29 : vector<1x32xf32> to vector<1x32xf32>
    %33 = vector.broadcast %32 : vector<1x32xf32> to vector<8x32xf32>
    %34 = arith.select %31, %33, %9 : vector<8x32xi1>, vector<8x32xf32>
    %35 = vector.extract_strided_slice %6 {offsets = [1, 0], sizes = [1, 128], strides = [1, 1]} : vector<8x128xf32> to vector<1x128xf32>
    %cst_10 = arith.constant dense<0.000000e+00> : vector<1x128xf32>
    %36 = tpu.matmul %29, %1, %cst_10 {dimension_numbers = #tpu.dot_dimension_numbers<[1], [0], [0], [1], [0, 0, 1, 1], [], []>} : vector<1x32xf32>, vector<32x128xf32>, vector<1x128xf32> -> vector<1x128xf32>
    %37 = arith.addf %35, %36 : vector<1x128xf32>
    %38 = vector.extract_strided_slice %37 {offsets = [0, 0], sizes = [1, 96], strides = [1, 1]} : vector<1x128xf32> to vector<1x96xf32>
    %39 = arith.negf %38 : vector<1x96xf32>
    %40 = math.exp %39 : vector<1x96xf32>
    %cst_11 = arith.constant 1.000000e+00 : f32
    %41 = vector.broadcast %cst_11 : f32 to vector<1x96xf32>
    %42 = arith.addf %41, %40 : vector<1x96xf32>
    %43 = arith.divf %41, %42 : vector<1x96xf32>
    %44 = vector.extract_strided_slice %37 {offsets = [0, 96], sizes = [1, 32], strides = [1, 1]} : vector<1x128xf32> to vector<1x32xf32>
    %45 = math.tanh %44 : vector<1x32xf32>
    %46 = vector.extract_strided_slice %43 {offsets = [0, 0], sizes = [1, 32], strides = [1, 1]} : vector<1x96xf32> to vector<1x32xf32>
    %47 = vector.extract_strided_slice %43 {offsets = [0, 32], sizes = [1, 32], strides = [1, 1]} : vector<1x96xf32> to vector<1x32xf32>
    %48 = vector.extract_strided_slice %43 {offsets = [0, 64], sizes = [1, 32], strides = [1, 1]} : vector<1x96xf32> to vector<1x32xf32>
    %49 = arith.mulf %47, %27 : vector<1x32xf32>
    %50 = arith.mulf %46, %45 : vector<1x32xf32>
    %51 = arith.addf %49, %50 : vector<1x32xf32>
    %52 = math.tanh %51 : vector<1x32xf32>
    %53 = arith.mulf %48, %52 : vector<1x32xf32>
    %c1_i32 = arith.constant 1 : i32
    %54 = vector.broadcast %c1_i32 : i32 to vector<8x32xi32>
    %55 = arith.cmpi eq, %10, %54 : vector<8x32xi32>
    %56 = vector.shape_cast %53 : vector<1x32xf32> to vector<1x32xf32>
    %57 = vector.broadcast %56 : vector<1x32xf32> to vector<8x32xf32>
    %58 = arith.select %55, %57, %34 : vector<8x32xi1>, vector<8x32xf32>
    %59 = vector.extract_strided_slice %6 {offsets = [2, 0], sizes = [1, 128], strides = [1, 1]} : vector<8x128xf32> to vector<1x128xf32>
    %cst_12 = arith.constant dense<0.000000e+00> : vector<1x128xf32>
    %60 = tpu.matmul %53, %1, %cst_12 {dimension_numbers = #tpu.dot_dimension_numbers<[1], [0], [0], [1], [0, 0, 1, 1], [], []>} : vector<1x32xf32>, vector<32x128xf32>, vector<1x128xf32> -> vector<1x128xf32>
    %61 = arith.addf %59, %60 : vector<1x128xf32>
    %62 = vector.extract_strided_slice %61 {offsets = [0, 0], sizes = [1, 96], strides = [1, 1]} : vector<1x128xf32> to vector<1x96xf32>
    %63 = arith.negf %62 : vector<1x96xf32>
    %64 = math.exp %63 : vector<1x96xf32>
    %cst_13 = arith.constant 1.000000e+00 : f32
    %65 = vector.broadcast %cst_13 : f32 to vector<1x96xf32>
    %66 = arith.addf %65, %64 : vector<1x96xf32>
    %67 = arith.divf %65, %66 : vector<1x96xf32>
    %68 = vector.extract_strided_slice %61 {offsets = [0, 96], sizes = [1, 32], strides = [1, 1]} : vector<1x128xf32> to vector<1x32xf32>
    %69 = math.tanh %68 : vector<1x32xf32>
    %70 = vector.extract_strided_slice %67 {offsets = [0, 0], sizes = [1, 32], strides = [1, 1]} : vector<1x96xf32> to vector<1x32xf32>
    %71 = vector.extract_strided_slice %67 {offsets = [0, 32], sizes = [1, 32], strides = [1, 1]} : vector<1x96xf32> to vector<1x32xf32>
    %72 = vector.extract_strided_slice %67 {offsets = [0, 64], sizes = [1, 32], strides = [1, 1]} : vector<1x96xf32> to vector<1x32xf32>
    %73 = arith.mulf %71, %51 : vector<1x32xf32>
    %74 = arith.mulf %70, %69 : vector<1x32xf32>
    %75 = arith.addf %73, %74 : vector<1x32xf32>
    %76 = math.tanh %75 : vector<1x32xf32>
    %77 = arith.mulf %72, %76 : vector<1x32xf32>
    %c2_i32 = arith.constant 2 : i32
    %78 = vector.broadcast %c2_i32 : i32 to vector<8x32xi32>
    %79 = arith.cmpi eq, %10, %78 : vector<8x32xi32>
    %80 = vector.shape_cast %77 : vector<1x32xf32> to vector<1x32xf32>
    %81 = vector.broadcast %80 : vector<1x32xf32> to vector<8x32xf32>
    %82 = arith.select %79, %81, %58 : vector<8x32xi1>, vector<8x32xf32>
    %83 = vector.extract_strided_slice %6 {offsets = [3, 0], sizes = [1, 128], strides = [1, 1]} : vector<8x128xf32> to vector<1x128xf32>
    %cst_14 = arith.constant dense<0.000000e+00> : vector<1x128xf32>
    %84 = tpu.matmul %77, %1, %cst_14 {dimension_numbers = #tpu.dot_dimension_numbers<[1], [0], [0], [1], [0, 0, 1, 1], [], []>} : vector<1x32xf32>, vector<32x128xf32>, vector<1x128xf32> -> vector<1x128xf32>
    %85 = arith.addf %83, %84 : vector<1x128xf32>
    %86 = vector.extract_strided_slice %85 {offsets = [0, 0], sizes = [1, 96], strides = [1, 1]} : vector<1x128xf32> to vector<1x96xf32>
    %87 = arith.negf %86 : vector<1x96xf32>
    %88 = math.exp %87 : vector<1x96xf32>
    %cst_15 = arith.constant 1.000000e+00 : f32
    %89 = vector.broadcast %cst_15 : f32 to vector<1x96xf32>
    %90 = arith.addf %89, %88 : vector<1x96xf32>
    %91 = arith.divf %89, %90 : vector<1x96xf32>
    %92 = vector.extract_strided_slice %85 {offsets = [0, 96], sizes = [1, 32], strides = [1, 1]} : vector<1x128xf32> to vector<1x32xf32>
    %93 = math.tanh %92 : vector<1x32xf32>
    %94 = vector.extract_strided_slice %91 {offsets = [0, 0], sizes = [1, 32], strides = [1, 1]} : vector<1x96xf32> to vector<1x32xf32>
    %95 = vector.extract_strided_slice %91 {offsets = [0, 32], sizes = [1, 32], strides = [1, 1]} : vector<1x96xf32> to vector<1x32xf32>
    %96 = vector.extract_strided_slice %91 {offsets = [0, 64], sizes = [1, 32], strides = [1, 1]} : vector<1x96xf32> to vector<1x32xf32>
    %97 = arith.mulf %95, %75 : vector<1x32xf32>
    %98 = arith.mulf %94, %93 : vector<1x32xf32>
    %99 = arith.addf %97, %98 : vector<1x32xf32>
    %100 = math.tanh %99 : vector<1x32xf32>
    %101 = arith.mulf %96, %100 : vector<1x32xf32>
    %c3_i32 = arith.constant 3 : i32
    %102 = vector.broadcast %c3_i32 : i32 to vector<8x32xi32>
    %103 = arith.cmpi eq, %10, %102 : vector<8x32xi32>
    %104 = vector.shape_cast %101 : vector<1x32xf32> to vector<1x32xf32>
    %105 = vector.broadcast %104 : vector<1x32xf32> to vector<8x32xf32>
    %106 = arith.select %103, %105, %82 : vector<8x32xi1>, vector<8x32xf32>
    %107 = vector.extract_strided_slice %6 {offsets = [4, 0], sizes = [1, 128], strides = [1, 1]} : vector<8x128xf32> to vector<1x128xf32>
    %cst_16 = arith.constant dense<0.000000e+00> : vector<1x128xf32>
    %108 = tpu.matmul %101, %1, %cst_16 {dimension_numbers = #tpu.dot_dimension_numbers<[1], [0], [0], [1], [0, 0, 1, 1], [], []>} : vector<1x32xf32>, vector<32x128xf32>, vector<1x128xf32> -> vector<1x128xf32>
    %109 = arith.addf %107, %108 : vector<1x128xf32>
    %110 = vector.extract_strided_slice %109 {offsets = [0, 0], sizes = [1, 96], strides = [1, 1]} : vector<1x128xf32> to vector<1x96xf32>
    %111 = arith.negf %110 : vector<1x96xf32>
    %112 = math.exp %111 : vector<1x96xf32>
    %cst_17 = arith.constant 1.000000e+00 : f32
    %113 = vector.broadcast %cst_17 : f32 to vector<1x96xf32>
    %114 = arith.addf %113, %112 : vector<1x96xf32>
    %115 = arith.divf %113, %114 : vector<1x96xf32>
    %116 = vector.extract_strided_slice %109 {offsets = [0, 96], sizes = [1, 32], strides = [1, 1]} : vector<1x128xf32> to vector<1x32xf32>
    %117 = math.tanh %116 : vector<1x32xf32>
    %118 = vector.extract_strided_slice %115 {offsets = [0, 0], sizes = [1, 32], strides = [1, 1]} : vector<1x96xf32> to vector<1x32xf32>
    %119 = vector.extract_strided_slice %115 {offsets = [0, 32], sizes = [1, 32], strides = [1, 1]} : vector<1x96xf32> to vector<1x32xf32>
    %120 = vector.extract_strided_slice %115 {offsets = [0, 64], sizes = [1, 32], strides = [1, 1]} : vector<1x96xf32> to vector<1x32xf32>
    %121 = arith.mulf %119, %99 : vector<1x32xf32>
    %122 = arith.mulf %118, %117 : vector<1x32xf32>
    %123 = arith.addf %121, %122 : vector<1x32xf32>
    %124 = math.tanh %123 : vector<1x32xf32>
    %125 = arith.mulf %120, %124 : vector<1x32xf32>
    %c4_i32 = arith.constant 4 : i32
    %126 = vector.broadcast %c4_i32 : i32 to vector<8x32xi32>
    %127 = arith.cmpi eq, %10, %126 : vector<8x32xi32>
    %128 = vector.shape_cast %125 : vector<1x32xf32> to vector<1x32xf32>
    %129 = vector.broadcast %128 : vector<1x32xf32> to vector<8x32xf32>
    %130 = arith.select %127, %129, %106 : vector<8x32xi1>, vector<8x32xf32>
    %131 = vector.extract_strided_slice %6 {offsets = [5, 0], sizes = [1, 128], strides = [1, 1]} : vector<8x128xf32> to vector<1x128xf32>
    %cst_18 = arith.constant dense<0.000000e+00> : vector<1x128xf32>
    %132 = tpu.matmul %125, %1, %cst_18 {dimension_numbers = #tpu.dot_dimension_numbers<[1], [0], [0], [1], [0, 0, 1, 1], [], []>} : vector<1x32xf32>, vector<32x128xf32>, vector<1x128xf32> -> vector<1x128xf32>
    %133 = arith.addf %131, %132 : vector<1x128xf32>
    %134 = vector.extract_strided_slice %133 {offsets = [0, 0], sizes = [1, 96], strides = [1, 1]} : vector<1x128xf32> to vector<1x96xf32>
    %135 = arith.negf %134 : vector<1x96xf32>
    %136 = math.exp %135 : vector<1x96xf32>
    %cst_19 = arith.constant 1.000000e+00 : f32
    %137 = vector.broadcast %cst_19 : f32 to vector<1x96xf32>
    %138 = arith.addf %137, %136 : vector<1x96xf32>
    %139 = arith.divf %137, %138 : vector<1x96xf32>
    %140 = vector.extract_strided_slice %133 {offsets = [0, 96], sizes = [1, 32], strides = [1, 1]} : vector<1x128xf32> to vector<1x32xf32>
    %141 = math.tanh %140 : vector<1x32xf32>
    %142 = vector.extract_strided_slice %139 {offsets = [0, 0], sizes = [1, 32], strides = [1, 1]} : vector<1x96xf32> to vector<1x32xf32>
    %143 = vector.extract_strided_slice %139 {offsets = [0, 32], sizes = [1, 32], strides = [1, 1]} : vector<1x96xf32> to vector<1x32xf32>
    %144 = vector.extract_strided_slice %139 {offsets = [0, 64], sizes = [1, 32], strides = [1, 1]} : vector<1x96xf32> to vector<1x32xf32>
    %145 = arith.mulf %143, %123 : vector<1x32xf32>
    %146 = arith.mulf %142, %141 : vector<1x32xf32>
    %147 = arith.addf %145, %146 : vector<1x32xf32>
    %148 = math.tanh %147 : vector<1x32xf32>
    %149 = arith.mulf %144, %148 : vector<1x32xf32>
    %c5_i32 = arith.constant 5 : i32
    %150 = vector.broadcast %c5_i32 : i32 to vector<8x32xi32>
    %151 = arith.cmpi eq, %10, %150 : vector<8x32xi32>
    %152 = vector.shape_cast %149 : vector<1x32xf32> to vector<1x32xf32>
    %153 = vector.broadcast %152 : vector<1x32xf32> to vector<8x32xf32>
    %154 = arith.select %151, %153, %130 : vector<8x32xi1>, vector<8x32xf32>
    %155 = vector.extract_strided_slice %6 {offsets = [6, 0], sizes = [1, 128], strides = [1, 1]} : vector<8x128xf32> to vector<1x128xf32>
    %cst_20 = arith.constant dense<0.000000e+00> : vector<1x128xf32>
    %156 = tpu.matmul %149, %1, %cst_20 {dimension_numbers = #tpu.dot_dimension_numbers<[1], [0], [0], [1], [0, 0, 1, 1], [], []>} : vector<1x32xf32>, vector<32x128xf32>, vector<1x128xf32> -> vector<1x128xf32>
    %157 = arith.addf %155, %156 : vector<1x128xf32>
    %158 = vector.extract_strided_slice %157 {offsets = [0, 0], sizes = [1, 96], strides = [1, 1]} : vector<1x128xf32> to vector<1x96xf32>
    %159 = arith.negf %158 : vector<1x96xf32>
    %160 = math.exp %159 : vector<1x96xf32>
    %cst_21 = arith.constant 1.000000e+00 : f32
    %161 = vector.broadcast %cst_21 : f32 to vector<1x96xf32>
    %162 = arith.addf %161, %160 : vector<1x96xf32>
    %163 = arith.divf %161, %162 : vector<1x96xf32>
    %164 = vector.extract_strided_slice %157 {offsets = [0, 96], sizes = [1, 32], strides = [1, 1]} : vector<1x128xf32> to vector<1x32xf32>
    %165 = math.tanh %164 : vector<1x32xf32>
    %166 = vector.extract_strided_slice %163 {offsets = [0, 0], sizes = [1, 32], strides = [1, 1]} : vector<1x96xf32> to vector<1x32xf32>
    %167 = vector.extract_strided_slice %163 {offsets = [0, 32], sizes = [1, 32], strides = [1, 1]} : vector<1x96xf32> to vector<1x32xf32>
    %168 = vector.extract_strided_slice %163 {offsets = [0, 64], sizes = [1, 32], strides = [1, 1]} : vector<1x96xf32> to vector<1x32xf32>
    %169 = arith.mulf %167, %147 : vector<1x32xf32>
    %170 = arith.mulf %166, %165 : vector<1x32xf32>
    %171 = arith.addf %169, %170 : vector<1x32xf32>
    %172 = math.tanh %171 : vector<1x32xf32>
    %173 = arith.mulf %168, %172 : vector<1x32xf32>
    %c6_i32 = arith.constant 6 : i32
    %174 = vector.broadcast %c6_i32 : i32 to vector<8x32xi32>
    %175 = arith.cmpi eq, %10, %174 : vector<8x32xi32>
    %176 = vector.shape_cast %173 : vector<1x32xf32> to vector<1x32xf32>
    %177 = vector.broadcast %176 : vector<1x32xf32> to vector<8x32xf32>
    %178 = arith.select %175, %177, %154 : vector<8x32xi1>, vector<8x32xf32>
    %179 = vector.extract_strided_slice %6 {offsets = [7, 0], sizes = [1, 128], strides = [1, 1]} : vector<8x128xf32> to vector<1x128xf32>
    %cst_22 = arith.constant dense<0.000000e+00> : vector<1x128xf32>
    %180 = tpu.matmul %173, %1, %cst_22 {dimension_numbers = #tpu.dot_dimension_numbers<[1], [0], [0], [1], [0, 0, 1, 1], [], []>} : vector<1x32xf32>, vector<32x128xf32>, vector<1x128xf32> -> vector<1x128xf32>
    %181 = arith.addf %179, %180 : vector<1x128xf32>
    %182 = vector.extract_strided_slice %181 {offsets = [0, 0], sizes = [1, 96], strides = [1, 1]} : vector<1x128xf32> to vector<1x96xf32>
    %183 = arith.negf %182 : vector<1x96xf32>
    %184 = math.exp %183 : vector<1x96xf32>
    %cst_23 = arith.constant 1.000000e+00 : f32
    %185 = vector.broadcast %cst_23 : f32 to vector<1x96xf32>
    %186 = arith.addf %185, %184 : vector<1x96xf32>
    %187 = arith.divf %185, %186 : vector<1x96xf32>
    %188 = vector.extract_strided_slice %181 {offsets = [0, 96], sizes = [1, 32], strides = [1, 1]} : vector<1x128xf32> to vector<1x32xf32>
    %189 = math.tanh %188 : vector<1x32xf32>
    %190 = vector.extract_strided_slice %187 {offsets = [0, 0], sizes = [1, 32], strides = [1, 1]} : vector<1x96xf32> to vector<1x32xf32>
    %191 = vector.extract_strided_slice %187 {offsets = [0, 32], sizes = [1, 32], strides = [1, 1]} : vector<1x96xf32> to vector<1x32xf32>
    %192 = vector.extract_strided_slice %187 {offsets = [0, 64], sizes = [1, 32], strides = [1, 1]} : vector<1x96xf32> to vector<1x32xf32>
    %193 = arith.mulf %191, %171 : vector<1x32xf32>
    %194 = arith.mulf %190, %189 : vector<1x32xf32>
    %195 = arith.addf %193, %194 : vector<1x32xf32>
    %196 = math.tanh %195 : vector<1x32xf32>
    %197 = arith.mulf %192, %196 : vector<1x32xf32>
    %c7_i32 = arith.constant 7 : i32
    %198 = vector.broadcast %c7_i32 : i32 to vector<8x32xi32>
    %199 = arith.cmpi eq, %10, %198 : vector<8x32xi32>
    %200 = vector.shape_cast %197 : vector<1x32xf32> to vector<1x32xf32>
    %201 = vector.broadcast %200 : vector<1x32xf32> to vector<8x32xf32>
    %202 = arith.select %199, %201, %178 : vector<8x32xi1>, vector<8x32xf32>
    %c0_24 = arith.constant 0 : index
    %c0_25 = arith.constant 0 : index
    %203 = vector.load %arg2[%c0_24, %c0_25] : memref<136x32xf32, #tpu.memory_space<vmem>>, vector<32x32xf32>
    %c32 = arith.constant 32 : index
    %c0_26 = arith.constant 0 : index
    %204 = vector.load %arg2[%c32, %c0_26] : memref<136x32xf32, #tpu.memory_space<vmem>>, vector<1x32xf32>
    %c40 = arith.constant 40 : index
    %c0_27 = arith.constant 0 : index
    %205 = vector.load %arg2[%c40, %c0_27] : memref<136x32xf32, #tpu.memory_space<vmem>>, vector<1x32xf32>
    %c48_28 = arith.constant 48 : index
    %c0_29 = arith.constant 0 : index
    %206 = vector.load %arg2[%c48_28, %c0_29] : memref<136x32xf32, #tpu.memory_space<vmem>>, vector<64x32xf32>
    %c112 = arith.constant 112 : index
    %c0_30 = arith.constant 0 : index
    %207 = vector.load %arg2[%c112, %c0_30] : memref<136x32xf32, #tpu.memory_space<vmem>>, vector<1x32xf32>
    %c120 = arith.constant 120 : index
    %c0_31 = arith.constant 0 : index
    %208 = vector.load %arg2[%c120, %c0_31] : memref<136x32xf32, #tpu.memory_space<vmem>>, vector<4x32xf32>
    %c128 = arith.constant 128 : index
    %c0_32 = arith.constant 0 : index
    %209 = vector.load %arg2[%c128, %c0_32] : memref<136x32xf32, #tpu.memory_space<vmem>>, vector<4x32xf32>
    %210 = vector.extract_strided_slice %209 {offsets = [0, 0], sizes = [4, 1], strides = [1, 1]} : vector<4x32xf32> to vector<4x1xf32>
    %cst_33 = arith.constant dense<0.000000e+00> : vector<8x32xf32>
    %211 = tpu.matmul %202, %203, %cst_33 {dimension_numbers = #tpu.dot_dimension_numbers<[1], [0], [0], [1], [0, 0, 1, 1], [], []>} : vector<8x32xf32>, vector<32x32xf32>, vector<8x32xf32> -> vector<8x32xf32>
    %212 = vector.broadcast %204 : vector<1x32xf32> to vector<8x32xf32>
    %213 = arith.addf %211, %212 : vector<8x32xf32>
    %214 = math.tanh %213 : vector<8x32xf32>
    %215 = vector.broadcast %205 : vector<1x32xf32> to vector<8x32xf32>
    %216 = arith.mulf %214, %215 : vector<8x32xf32>
    %cst_34 = arith.constant dense<0.000000e+00> : vector<8xf32>
    %217 = vector.multi_reduction <add>, %216, %cst_34 [1] : vector<8x32xf32> to vector<8xf32>
    %218 = vector.shape_cast %217 : vector<8xf32> to vector<8x1xf32>
    %cst_35 = arith.constant dense<0xFF800000> : vector<1xf32>
    %219 = vector.multi_reduction <maximumf>, %218, %cst_35 [0] : vector<8x1xf32> to vector<1xf32>
    %220 = vector.shape_cast %219 : vector<1xf32> to vector<1x1xf32>
    %221 = vector.broadcast %220 : vector<1x1xf32> to vector<8x1xf32>
    %222 = arith.subf %218, %221 : vector<8x1xf32>
    %223 = math.exp %222 : vector<8x1xf32>
    %cst_36 = arith.constant dense<0.000000e+00> : vector<1xf32>
    %224 = vector.multi_reduction <add>, %223, %cst_36 [0] : vector<8x1xf32> to vector<1xf32>
    %225 = vector.shape_cast %224 : vector<1xf32> to vector<1x1xf32>
    %226 = vector.broadcast %225 : vector<1x1xf32> to vector<8x1xf32>
    %227 = arith.divf %223, %226 : vector<8x1xf32>
    %228 = vector.broadcast %227 : vector<8x1xf32> to vector<8x32xf32>
    %229 = arith.mulf %228, %202 : vector<8x32xf32>
    %cst_37 = arith.constant dense<0.000000e+00> : vector<32xf32>
    %230 = vector.multi_reduction <add>, %229, %cst_37 [0] : vector<8x32xf32> to vector<32xf32>
    %231 = vector.shape_cast %230 : vector<32xf32> to vector<1x32xf32>
    %232 = tpu.concatenate %231, %197 in 1 : vector<1x32xf32>, vector<1x32xf32> -> vector<1x64xf32>
    %cst_38 = arith.constant dense<0.000000e+00> : vector<1x32xf32>
    %233 = tpu.matmul %232, %206, %cst_38 {dimension_numbers = #tpu.dot_dimension_numbers<[1], [0], [0], [1], [0, 0, 1, 1], [], []>} : vector<1x64xf32>, vector<64x32xf32>, vector<1x32xf32> -> vector<1x32xf32>
    %234 = arith.addf %233, %207 : vector<1x32xf32>
    %235 = math.tanh %234 : vector<1x32xf32>
    %236 = vector.broadcast %235 : vector<1x32xf32> to vector<4x32xf32>
    %237 = arith.mulf %236, %208 : vector<4x32xf32>
    %cst_39 = arith.constant dense<0.000000e+00> : vector<4xf32>
    %238 = vector.multi_reduction <add>, %237, %cst_39 [1] : vector<4x32xf32> to vector<4xf32>
    %239 = vector.shape_cast %238 : vector<4xf32> to vector<4x1xf32>
    %240 = arith.addf %239, %210 : vector<4x1xf32>
    %c0_40 = arith.constant 0 : index
    %c0_41 = arith.constant 0 : index
    %241 = vector.load %arg3[%c0_40, %c0_41] : memref<4x1xf32, #tpu.memory_space<vmem>>, vector<4x1xf32>
    tpu.vector_store %arg3[%c0_40, %c0_41], %240 {strides = array<i32>} : memref<4x1xf32, #tpu.memory_space<vmem>>, vector<4x1xf32>,
    return
  }
}

</mosaic_0001>

<llo_original>
// kernel: tpu_custom_call.1
$region0: #{tpu_custom_call.1}
  #allocation0 [shape = 'u32[]', space=smem, size = 0x4, offset = 0x4, fixed_abs, tag = 'smem constant byte address 0x4 - core index']
  #allocation1 [shape = 'u32[144,128]{1,0:T(1,128)}', space=vmem, size = 0x12000, scoped, tag = 'internal scratch']
  %s0 = inlined_call_operand.vmem [shape: f32[8,16], index: 0, kind: input, shape index: {}]
  %s1 = inlined_call_operand.vmem [shape: f32[56,128], index: 1, kind: input, shape index: {}]
  %s2 = inlined_call_operand.vmem [shape: f32[136,32], index: 2, kind: input, shape index: {}]
  %s3 = inlined_call_operand.vmem [shape: f32[4,1], index: 3, kind: output, shape index: {}]
  %s4 = sld [smem:[#allocation0]]
  $region22: #{tpu_custom_call.1} parent=0
    _
  %s6 = ssub.s32 1, %s4
  %s7 = scalar_select 0, %s6, %s4
  // Predicated region
  $region2: #{tpu_custom_call.1} parent=0 // pred_check
    _
  $region3: #{tpu_custom_call.1} parent=0 // pred_check_branch
    %9 = sbr.rel (0) target = $region5
  $region4: #{tpu_custom_call.1} parent=0 // pred_region
    _
  $region5: #{tpu_custom_call.1} parent=0 // pred_fallthru
    _
  // Predicated region
  $region6: #{tpu_custom_call.1} parent=0 // pred_check
    _
  $region7: #{tpu_custom_call.1} parent=0 // pred_check_branch
    %11 = sbr.rel (0) target = $region9
  $region8: #{tpu_custom_call.1} parent=0 // pred_region
    _
  $region9: #{tpu_custom_call.1} parent=0 // pred_fallthru
    _
  // Predicated region
  $region10: #{tpu_custom_call.1} parent=0 // pred_check
    _
  $region11: #{tpu_custom_call.1} parent=0 // pred_check_branch
    %13 = sbr.rel (0) target = $region13
  $region12: #{tpu_custom_call.1} parent=0 // pred_region
    _
  $region13: #{tpu_custom_call.1} parent=0 // pred_fallthru
    _
  %v14 = vld [vmem:[%s1] sm:$0xff]
  %v15 = vld [vmem:[%s1 + $0x8] sm:$0xff]
  %v16 = vld [vmem:[%s1 + $0x10] sm:$0xff]
  %v17 = vld [vmem:[%s1 + $0x18] sm:$0xff]
  %v18 = vld [vmem:[%s1 + $0x20] sm:$0xff]
  %v19 = vld [vmem:[%s1 + $0x28] sm:$0xff]
  %v20 = vld [vmem:[%s1 + $0x30] sm:$0x1]
  %v21 = vld [vmem:[%s0] sm:$0xff]
  %v22 = vlaneseq
  %v23 = vshrl.u32 %v22, 7
  %v24 = vsub.s32 0, %v23
  %v25 = vrot.slane %v20, %v24
  %vm26 = vcmask 130048
  %v28 = vsel %vm26, %v21, 0
  %30 = vmatprep.subr.mxu0 0.0
  %31 = vmatpush1.msra.mxu0 %v14
  %32 = vmatprep.subr.mxu0 0.0
  %33 = vmatpush1.msra.mxu0 %v15
  %34 = vmatprep.subr.mxu0 0.0
  %35 = vmatpush1.msra.mxu0 0.0
  %36 = vmatprep.subr.mxu0 0.0
  %37 = vmatpush1.msra.mxu0 0.0
  %38 = vmatprep.subr.mxu0 0.0
  %39 = vmatpush1.msra.mxu0 0.0
  %40 = vmatprep.subr.mxu0 0.0
  %41 = vmatpush1.msra.mxu0 0.0
  %42 = vmatprep.subr.mxu0 0.0
  %43 = vmatpush1.msra.mxu0 0.0
  %44 = vmatprep.subr.mxu0 0.0
  %45 = vmatpush1.msra.mxu0 0.0
  %46 = vmatprep.subr.mxu0 0.0
  %47 = vmatpush1.msra.mxu0 0.0
  %48 = vmatprep.subr.mxu0 0.0
  %49 = vmatpush1.msra.mxu0 0.0
  %50 = vmatprep.subr.mxu0 0.0
  %51 = vmatpush1.msra.mxu0 0.0
  %52 = vmatprep.subr.mxu0 0.0
  %53 = vmatpush1.msra.mxu0 0.0
  %54 = vmatprep.subr.mxu0 0.0
  %55 = vmatpush1.msra.mxu0 0.0
  %56 = vmatprep.subr.mxu0 0.0
  %57 = vmatpush1.msra.mxu0 0.0
  %58 = vmatprep.subr.mxu0 0.0
  %59 = vmatpush1.msra.mxu0 0.0
  %60 = vmatprep.subr.mxu0 0.0
  %61 = vmatpush1.msra.mxu0 0.0
  %62 = vmatprep.subr.mxu0 0.0
  %63 = vmatpush1.msra.mxu0 0.0
  %64 = vmatprep.subr.mxu0 0.0
  %65 = vmatpush1.msra.mxu0 0.0
  %66 = vmatprep.subr.mxu0 0.0
  %67 = vmatpush1.msra.mxu0 0.0
  %68 = vmatprep.subr.mxu0 0.0
  %69 = vmatpush1.msra.mxu0 0.0
  %70 = vmatprep.subr.mxu0 0.0
  %71 = vmatpush1.msra.mxu0 0.0
  %72 = vmatprep.subr.mxu0 0.0
  %73 = vmatpush1.msra.mxu0 0.0
  %74 = vmatprep.subr.mxu0 0.0
  %75 = vmatpush1.msra.mxu0 0.0
  %76 = vmatprep.subr.mxu0 0.0
  %77 = vmatpush1.msra.mxu0 0.0
  %78 = vmatprep.subr.mxu0 0.0
  %79 = vmatpush1.msra.mxu0 0.0
  %80 = vmatprep.subr.mxu0 0.0
  %81 = vmatpush1.msra.mxu0 0.0
  %82 = vmatprep.subr.mxu0 0.0
  %83 = vmatpush1.msra.mxu0 0.0
  %84 = vmatprep.subr.mxu0 0.0
  %85 = vmatpush1.msra.mxu0 0.0
  %86 = vmatprep.subr.mxu0 0.0
  %87 = vmatpush1.msra.mxu0 0.0
  %88 = vmatprep.subr.mxu0 0.0
  %89 = vmatpush1.msra.mxu0 0.0
  %90 = vmatprep.subr.mxu0 0.0
  %91 = vmatpush1.msra.mxu0 0.0
  %92 = vmatprep.subr.mxu0 0.0
  %93 = vmatpush1.msra.mxu0 0.0
  %94 = vmatprep.mubr.f32.mxu0 0.0
  %95 = vmatmul.mubr.f32.gmra.mrb[0].mxu0 %v28
  %v96 = vpop.f32.mrb[0].mxu0
  %v97 = vadd.f32 %v25, %v96
  %v98 = vpop.f32.mrb[0].mxu0
  %99 = vdwg.mxu0
  %v100 = vlaneseq
  %v101 = vshrl.u32 %v100, 7
  %vm102 = vcmask 261120
  %v104 = vsel %vm102, 0.0, 0
  %106 = vmatprep.subr.mxu0 0.0
  %107 = vmatpush1.msra.mxu0 %v16
  %108 = vmatprep.subr.mxu0 0.0
  %109 = vmatpush1.msra.mxu0 %v17
  %110 = vmatprep.subr.mxu0 0.0
  %111 = vmatpush1.msra.mxu0 %v18
  %112 = vmatprep.subr.mxu0 0.0
  %113 = vmatpush1.msra.mxu0 %v19
  %114 = vmatprep.subr.mxu0 0.0
  %115 = vmatpush1.msra.mxu0 0.0
  %116 = vmatprep.subr.mxu0 0.0
  %117 = vmatpush1.msra.mxu0 0.0
  %118 = vmatprep.subr.mxu0 0.0
  %119 = vmatpush1.msra.mxu0 0.0
  %120 = vmatprep.subr.mxu0 0.0
  %121 = vmatpush1.msra.mxu0 0.0
  %122 = vmatprep.subr.mxu0 0.0
  %123 = vmatpush1.msra.mxu0 0.0
  %124 = vmatprep.subr.mxu0 0.0
  %125 = vmatpush1.msra.mxu0 0.0
  %126 = vmatprep.subr.mxu0 0.0
  %127 = vmatpush1.msra.mxu0 0.0
  %128 = vmatprep.subr.mxu0 0.0
  %129 = vmatpush1.msra.mxu0 0.0
  %130 = vmatprep.subr.mxu0 0.0
  %131 = vmatpush1.msra.mxu0 0.0
  %132 = vmatprep.subr.mxu0 0.0
  %133 = vmatpush1.msra.mxu0 0.0
  %134 = vmatprep.subr.mxu0 0.0
  %135 = vmatpush1.msra.mxu0 0.0
  %136 = vmatprep.subr.mxu0 0.0
  %137 = vmatpush1.msra.mxu0 0.0
  %138 = vmatprep.subr.mxu0 0.0
  %139 = vmatpush1.msra.mxu0 0.0
  %140 = vmatprep.subr.mxu0 0.0
  %141 = vmatpush1.msra.mxu0 0.0
  %142 = vmatprep.subr.mxu0 0.0
  %143 = vmatpush1.msra.mxu0 0.0
  %144 = vmatprep.subr.mxu0 0.0
  %145 = vmatpush1.msra.mxu0 0.0
  %146 = vmatprep.subr.mxu0 0.0
  %147 = vmatpush1.msra.mxu0 0.0
  %148 = vmatprep.subr.mxu0 0.0
  %149 = vmatpush1.msra.mxu0 0.0
  %150 = vmatprep.subr.mxu0 0.0
  %151 = vmatpush1.msra.mxu0 0.0
  %152 = vmatprep.subr.mxu0 0.0
  %153 = vmatpush1.msra.mxu0 0.0
  %154 = vmatprep.subr.mxu0 0.0
  %155 = vmatpush1.msra.mxu0 0.0
  %156 = vmatprep.subr.mxu0 0.0
  %157 = vmatpush1.msra.mxu0 0.0
  %158 = vmatprep.subr.mxu0 0.0
  %159 = vmatpush1.msra.mxu0 0.0
  %160 = vmatprep.subr.mxu0 0.0
  %161 = vmatpush1.msra.mxu0 0.0
  %162 = vmatprep.subr.mxu0 0.0
  %163 = vmatpush1.msra.mxu0 0.0
  %164 = vmatprep.subr.mxu0 0.0
  %165 = vmatpush1.msra.mxu0 0.0
  %166 = vmatprep.subr.mxu0 0.0
  %167 = vmatpush1.msra.mxu0 0.0
  %168 = vmatprep.subr.mxu0 0.0
  %169 = vmatpush1.msra.mxu0 0.0
  %170 = vmatprep.mubr.f32.mxu0 0.0
  %171 = vmatmul.mubr.f32.gmra.mrb[0].mxu0 %v104
  %v172 = vpop.f32.mrb[0].mxu0
  %v173 = vadd.f32 0.0, %v172
  %v174 = vpop.f32.mrb[0].mxu0
  %175 = vdwg.mxu0
  %v176 = vadd.f32 %v97, %v173
  %v177 = vxor.u32 %v176, 2147483648
  %v178 = vmul.f32 %v177, 1.442695
  %v179 = vpow.pop %v178
  %v180 = vadd.f32 %v179, 1.0
  %v181 = vrcp.pop %v180
  %v182 = vmul.f32 1.0, %v181
  %v183 = vtanh.pop %v176
  %v184 = vmul.f32 %v182, 0.0
  %186 = vrot.lane.b32.xlu0 %v183, 32
  %v187 = vpop.permute.xlu0 %186
  %v189 = vmul.f32 %v182, %v187
  %191 = vrot.lane.b32.xlu0 %v189, 32
  %v192 = vpop.permute.xlu0 %191
  %v194 = vadd.f32 %v184, %v192
  %v195 = vtanh.pop %v194
  %197 = vrot.lane.b32.xlu0 %v195, 32
  %v198 = vpop.permute.xlu0 %197
  %v200 = vmul.f32 %v182, %v198
  %vm201 = vcmp.eq.s32.totalorder %v101, 0
  %v202 = vlaneseq
  %v203 = vshrl.u32 %v202, 7
  %v204 = vsub.s32 0, %v203
  %v205 = vrot.slane %v200, %v204
  %v206 = vsel %vm201, %v205, 0.0
  %208 = vrot.lane.b32.xlu0 %v200, 64
  %v209 = vpop.permute.xlu0 %208
  %v210 = vsel %vm102, %v209, 0
  %212 = vmatprep.subr.mxu0 0.0
  %213 = vmatpush1.msra.mxu0 %v16
  %214 = vmatprep.subr.mxu0 0.0
  %215 = vmatpush1.msra.mxu0 %v17
  %216 = vmatprep.subr.mxu0 0.0
  %217 = vmatpush1.msra.mxu0 %v18
  %218 = vmatprep.subr.mxu0 0.0
  %219 = vmatpush1.msra.mxu0 %v19
  %220 = vmatprep.subr.mxu0 0.0
  %221 = vmatpush1.msra.mxu0 0.0
  %222 = vmatprep.subr.mxu0 0.0
  %223 = vmatpush1.msra.mxu0 0.0
  %224 = vmatprep.subr.mxu0 0.0
  %225 = vmatpush1.msra.mxu0 0.0
  %226 = vmatprep.subr.mxu0 0.0
  %227 = vmatpush1.msra.mxu0 0.0
  %228 = vmatprep.subr.mxu0 0.0
  %229 = vmatpush1.msra.mxu0 0.0
  %230 = vmatprep.subr.mxu0 0.0
  %231 = vmatpush1.msra.mxu0 0.0
  %232 = vmatprep.subr.mxu0 0.0
  %233 = vmatpush1.msra.mxu0 0.0
  %234 = vmatprep.subr.mxu0 0.0
  %235 = vmatpush1.msra.mxu0 0.0
  %236 = vmatprep.subr.mxu0 0.0
  %237 = vmatpush1.msra.mxu0 0.0
  %238 = vmatprep.subr.mxu0 0.0
  %239 = vmatpush1.msra.mxu0 0.0
  %240 = vmatprep.subr.mxu0 0.0
  %241 = vmatpush1.msra.mxu0 0.0
  %242 = vmatprep.subr.mxu0 0.0
  %243 = vmatpush1.msra.mxu0 0.0
  %244 = vmatprep.subr.mxu0 0.0
  %245 = vmatpush1.msra.mxu0 0.0
  %246 = vmatprep.subr.mxu0 0.0
  %247 = vmatpush1.msra.mxu0 0.0
  %248 = vmatprep.subr.mxu0 0.0
  %249 = vmatpush1.msra.mxu0 0.0
  %250 = vmatprep.subr.mxu0 0.0
  %251 = vmatpush1.msra.mxu0 0.0
  %252 = vmatprep.subr.mxu0 0.0
  %253 = vmatpush1.msra.mxu0 0.0
  %254 = vmatprep.subr.mxu0 0.0
  %255 = vmatpush1.msra.mxu0 0.0
  %256 = vmatprep.subr.mxu0 0.0
  %257 = vmatpush1.msra.mxu0 0.0
  %258 = vmatprep.subr.mxu0 0.0
  %259 = vmatpush1.msra.mxu0 0.0
  %260 = vmatprep.subr.mxu0 0.0
  %261 = vmatpush1.msra.mxu0 0.0
  %262 = vmatprep.subr.mxu0 0.0
  %263 = vmatpush1.msra.mxu0 0.0
  %264 = vmatprep.subr.mxu0 0.0
  %265 = vmatpush1.msra.mxu0 0.0
  %266 = vmatprep.subr.mxu0 0.0
  %267 = vmatpush1.msra.mxu0 0.0
  %268 = vmatprep.subr.mxu0 0.0
  %269 = vmatpush1.msra.mxu0 0.0
  %270 = vmatprep.subr.mxu0 0.0
  %271 = vmatpush1.msra.mxu0 0.0
  %272 = vmatprep.subr.mxu0 0.0
  %273 = vmatpush1.msra.mxu0 0.0
  %274 = vmatprep.subr.mxu0 0.0
  %275 = vmatpush1.msra.mxu0 0.0
  %276 = vmatprep.mubr.f32.mxu0 0.0
  %277 = vmatmul.mubr.f32.gmra.mrb[0].mxu0 %v210
  %v278 = vpop.f32.mrb[0].mxu0
  %v279 = vadd.f32 0.0, %v278
  %v280 = vpop.f32.mrb[0].mxu0
  %281 = vdwg.mxu0
  %v283 = vrot.slane %v279, 7
  %v285 = vadd.f32 %v97, %v283
  %v286 = vxor.u32 %v285, 2147483648
  %v287 = vmul.f32 %v286, 1.442695
  %v288 = vpow.pop %v287
  %v289 = vadd.f32 %v288, 1.0
  %v290 = vrcp.pop %v289
  %v291 = vmul.f32 1.0, %v290
  %v292 = vtanh.pop %v285
  %v294 = vrot.slane %v194, 7
  %v296 = vmul.f32 %v291, %v294
  %298 = vrot.lane.b32.xlu0 %v292, 32
  %v299 = vpop.permute.xlu0 %298
  %v301 = vmul.f32 %v291, %v299
  %303 = vrot.lane.b32.xlu0 %v301, 32
  %v304 = vpop.permute.xlu0 %303
  %v306 = vadd.f32 %v296, %v304
  %v307 = vtanh.pop %v306
  %309 = vrot.lane.b32.xlu0 %v307, 32
  %v310 = vpop.permute.xlu0 %309
  %v312 = vmul.f32 %v291, %v310
  %vm313 = vcmp.eq.s32.totalorder %v101, 1
  %v314 = vlaneseq
  %v315 = vshrl.u32 %v314, 7
  %v316 = vsub.s32 1, %v315
  %v317 = vrot.slane %v312, %v316
  %v318 = vsel %vm313, %v317, %v206
  %v320 = vrot.slane %v312, 1
  %321 = vrot.lane.b32.xlu0 %v320, 64
  %v322 = vpop.permute.xlu0 %321
  %v323 = vsel %vm102, %v322, 0
  %325 = vmatprep.subr.mxu0 0.0
  %326 = vmatpush1.msra.mxu0 %v16
  %327 = vmatprep.subr.mxu0 0.0
  %328 = vmatpush1.msra.mxu0 %v17
  %329 = vmatprep.subr.mxu0 0.0
  %330 = vmatpush1.msra.mxu0 %v18
  %331 = vmatprep.subr.mxu0 0.0
  %332 = vmatpush1.msra.mxu0 %v19
  %333 = vmatprep.subr.mxu0 0.0
  %334 = vmatpush1.msra.mxu0 0.0
  %335 = vmatprep.subr.mxu0 0.0
  %336 = vmatpush1.msra.mxu0 0.0
  %337 = vmatprep.subr.mxu0 0.0
  %338 = vmatpush1.msra.mxu0 0.0
  %339 = vmatprep.subr.mxu0 0.0
  %340 = vmatpush1.msra.mxu0 0.0
  %341 = vmatprep.subr.mxu0 0.0
  %342 = vmatpush1.msra.mxu0 0.0
  %343 = vmatprep.subr.mxu0 0.0
  %344 = vmatpush1.msra.mxu0 0.0
  %345 = vmatprep.subr.mxu0 0.0
  %346 = vmatpush1.msra.mxu0 0.0
  %347 = vmatprep.subr.mxu0 0.0
  %348 = vmatpush1.msra.mxu0 0.0
  %349 = vmatprep.subr.mxu0 0.0
  %350 = vmatpush1.msra.mxu0 0.0
  %351 = vmatprep.subr.mxu0 0.0
  %352 = vmatpush1.msra.mxu0 0.0
  %353 = vmatprep.subr.mxu0 0.0
  %354 = vmatpush1.msra.mxu0 0.0
  %355 = vmatprep.subr.mxu0 0.0
  %356 = vmatpush1.msra.mxu0 0.0
  %357 = vmatprep.subr.mxu0 0.0
  %358 = vmatpush1.msra.mxu0 0.0
  %359 = vmatprep.subr.mxu0 0.0
  %360 = vmatpush1.msra.mxu0 0.0
  %361 = vmatprep.subr.mxu0 0.0
  %362 = vmatpush1.msra.mxu0 0.0
  %363 = vmatprep.subr.mxu0 0.0
  %364 = vmatpush1.msra.mxu0 0.0
  %365 = vmatprep.subr.mxu0 0.0
  %366 = vmatpush1.msra.mxu0 0.0
  %367 = vmatprep.subr.mxu0 0.0
  %368 = vmatpush1.msra.mxu0 0.0
  %369 = vmatprep.subr.mxu0 0.0
  %370 = vmatpush1.msra.mxu0 0.0
  %371 = vmatprep.subr.mxu0 0.0
  %372 = vmatpush1.msra.mxu0 0.0
  %373 = vmatprep.subr.mxu0 0.0
  %374 = vmatpush1.msra.mxu0 0.0
  %375 = vmatprep.subr.mxu0 0.0
  %376 = vmatpush1.msra.mxu0 0.0
  %377 = vmatprep.subr.mxu0 0.0
  %378 = vmatpush1.msra.mxu0 0.0
  %379 = vmatprep.subr.mxu0 0.0
  %380 = vmatpush1.msra.mxu0 0.0
  %381 = vmatprep.subr.mxu0 0.0
  %382 = vmatpush1.msra.mxu0 0.0
  %383 = vmatprep.subr.mxu0 0.0
  %384 = vmatpush1.msra.mxu0 0.0
  %385 = vmatprep.subr.mxu0 0.0
  %386 = vmatpush1.msra.mxu0 0.0
  %387 = vmatprep.subr.mxu0 0.0
  %388 = vmatpush1.msra.mxu0 0.0
  %389 = vmatprep.mubr.f32.mxu0 0.0
  %390 = vmatmul.mubr.f32.gmra.mrb[0].mxu0 %v323
  %v391 = vpop.f32.mrb[0].mxu0
  %v392 = vadd.f32 0.0, %v391
  %v393 = vpop.f32.mrb[0].mxu0
  %394 = vdwg.mxu0
  %v396 = vrot.slane %v392, 6
  %v398 = vadd.f32 %v97, %v396
  %v399 = vxor.u32 %v398, 2147483648
  %v400 = vmul.f32 %v399, 1.442695
  %v401 = vpow.pop %v400
  %v402 = vadd.f32 %v401, 1.0
  %v403 = vrcp.pop %v402
  %v404 = vmul.f32 1.0, %v403
  %v405 = vtanh.pop %v398
  %v407 = vrot.slane %v306, 7
  %v409 = vmul.f32 %v404, %v407
  %411 = vrot.lane.b32.xlu0 %v405, 32
  %v412 = vpop.permute.xlu0 %411
  %v414 = vmul.f32 %v404, %v412
  %416 = vrot.lane.b32.xlu0 %v414, 32
  %v417 = vpop.permute.xlu0 %416
  %v419 = vadd.f32 %v409, %v417
  %v420 = vtanh.pop %v419
  %422 = vrot.lane.b32.xlu0 %v420, 32
  %v423 = vpop.permute.xlu0 %422
  %v425 = vmul.f32 %v404, %v423
  %vm426 = vcmp.eq.s32.totalorder %v101, 2
  %v427 = vlaneseq
  %v428 = vshrl.u32 %v427, 7
  %v429 = vsub.s32 2, %v428
  %v430 = vrot.slane %v425, %v429
  %v431 = vsel %vm426, %v430, %v318
  %v433 = vrot.slane %v425, 2
  %434 = vrot.lane.b32.xlu0 %v433, 64
  %v435 = vpop.permute.xlu0 %434
  %v436 = vsel %vm102, %v435, 0
  %438 = vmatprep.subr.mxu0 0.0
  %439 = vmatpush1.msra.mxu0 %v16
  %440 = vmatprep.subr.mxu0 0.0
  %441 = vmatpush1.msra.mxu0 %v17
  %442 = vmatprep.subr.mxu0 0.0
  %443 = vmatpush1.msra.mxu0 %v18
  %444 = vmatprep.subr.mxu0 0.0
  %445 = vmatpush1.msra.mxu0 %v19
  %446 = vmatprep.subr.mxu0 0.0
  %447 = vmatpush1.msra.mxu0 0.0
  %448 = vmatprep.subr.mxu0 0.0
  %449 = vmatpush1.msra.mxu0 0.0
  %450 = vmatprep.subr.mxu0 0.0
  %451 = vmatpush1.msra.mxu0 0.0
  %452 = vmatprep.subr.mxu0 0.0
  %453 = vmatpush1.msra.mxu0 0.0
  %454 = vmatprep.subr.mxu0 0.0
  %455 = vmatpush1.msra.mxu0 0.0
  %456 = vmatprep.subr.mxu0 0.0
  %457 = vmatpush1.msra.mxu0 0.0
  %458 = vmatprep.subr.mxu0 0.0
  %459 = vmatpush1.msra.mxu0 0.0
  %460 = vmatprep.subr.mxu0 0.0
  %461 = vmatpush1.msra.mxu0 0.0
  %462 = vmatprep.subr.mxu0 0.0
  %463 = vmatpush1.msra.mxu0 0.0
  %464 = vmatprep.subr.mxu0 0.0
  %465 = vmatpush1.msra.mxu0 0.0
  %466 = vmatprep.subr.mxu0 0.0
  %467 = vmatpush1.msra.mxu0 0.0
  %468 = vmatprep.subr.mxu0 0.0
  %469 = vmatpush1.msra.mxu0 0.0
  %470 = vmatprep.subr.mxu0 0.0
  %471 = vmatpush1.msra.mxu0 0.0
  %472 = vmatprep.subr.mxu0 0.0
  %473 = vmatpush1.msra.mxu0 0.0
  %474 = vmatprep.subr.mxu0 0.0
  %475 = vmatpush1.msra.mxu0 0.0
  %476 = vmatprep.subr.mxu0 0.0
  %477 = vmatpush1.msra.mxu0 0.0
  %478 = vmatprep.subr.mxu0 0.0
  %479 = vmatpush1.msra.mxu0 0.0
  %480 = vmatprep.subr.mxu0 0.0
  %481 = vmatpush1.msra.mxu0 0.0
  %482 = vmatprep.subr.mxu0 0.0
  %483 = vmatpush1.msra.mxu0 0.0
  %484 = vmatprep.subr.mxu0 0.0
  %485 = vmatpush1.msra.mxu0 0.0
  %486 = vmatprep.subr.mxu0 0.0
  %487 = vmatpush1.msra.mxu0 0.0
  %488 = vmatprep.subr.mxu0 0.0
  %489 = vmatpush1.msra.mxu0 0.0
  %490 = vmatprep.subr.mxu0 0.0
  %491 = vmatpush1.msra.mxu0 0.0
  %492 = vmatprep.subr.mxu0 0.0
  %493 = vmatpush1.msra.mxu0 0.0
  %494 = vmatprep.subr.mxu0 0.0
  %495 = vmatpush1.msra.mxu0 0.0
  %496 = vmatprep.subr.mxu0 0.0
  %497 = vmatpush1.msra.mxu0 0.0
  %498 = vmatprep.subr.mxu0 0.0
  %499 = vmatpush1.msra.mxu0 0.0
  %500 = vmatprep.subr.mxu0 0.0
  %501 = vmatpush1.msra.mxu0 0.0
  %502 = vmatprep.mubr.f32.mxu0 0.0
  %503 = vmatmul.mubr.f32.gmra.mrb[0].mxu0 %v436
  %v504 = vpop.f32.mrb[0].mxu0
  %v505 = vadd.f32 0.0, %v504
  %v506 = vpop.f32.mrb[0].mxu0
  %507 = vdwg.mxu0
  %v509 = vrot.slane %v505, 5
  %v511 = vadd.f32 %v97, %v509
  %v512 = vxor.u32 %v511, 2147483648
  %v513 = vmul.f32 %v512, 1.442695
  %v514 = vpow.pop %v513
  %v515 = vadd.f32 %v514, 1.0
  %v516 = vrcp.pop %v515
  %v517 = vmul.f32 1.0, %v516
  %v518 = vtanh.pop %v511
  %v520 = vrot.slane %v419, 7
  %v522 = vmul.f32 %v517, %v520
  %524 = vrot.lane.b32.xlu0 %v518, 32
  %v525 = vpop.permute.xlu0 %524
  %v527 = vmul.f32 %v517, %v525
  %529 = vrot.lane.b32.xlu0 %v527, 32
  %v530 = vpop.permute.xlu0 %529
  %v532 = vadd.f32 %v522, %v530
  %v533 = vtanh.pop %v532
  %535 = vrot.lane.b32.xlu0 %v533, 32
  %v536 = vpop.permute.xlu0 %535
  %v538 = vmul.f32 %v517, %v536
  %vm539 = vcmp.eq.s32.totalorder %v101, 3
  %v540 = vlaneseq
  %v541 = vshrl.u32 %v540, 7
  %v542 = vsub.s32 3, %v541
  %v543 = vrot.slane %v538, %v542
  %v544 = vsel %vm539, %v543, %v431
  %v546 = vrot.slane %v538, 3
  %547 = vrot.lane.b32.xlu0 %v546, 64
  %v548 = vpop.permute.xlu0 %547
  %v549 = vsel %vm102, %v548, 0
  %551 = vmatprep.subr.mxu0 0.0
  %552 = vmatpush1.msra.mxu0 %v16
  %553 = vmatprep.subr.mxu0 0.0
  %554 = vmatpush1.msra.mxu0 %v17
  %555 = vmatprep.subr.mxu0 0.0
  %556 = vmatpush1.msra.mxu0 %v18
  %557 = vmatprep.subr.mxu0 0.0
  %558 = vmatpush1.msra.mxu0 %v19
  %559 = vmatprep.subr.mxu0 0.0
  %560 = vmatpush1.msra.mxu0 0.0
  %561 = vmatprep.subr.mxu0 0.0
  %562 = vmatpush1.msra.mxu0 0.0
  %563 = vmatprep.subr.mxu0 0.0
  %564 = vmatpush1.msra.mxu0 0.0
  %565 = vmatprep.subr.mxu0 0.0
  %566 = vmatpush1.msra.mxu0 0.0
  %567 = vmatprep.subr.mxu0 0.0
  %568 = vmatpush1.msra.mxu0 0.0
  %569 = vmatprep.subr.mxu0 0.0
  %570 = vmatpush1.msra.mxu0 0.0
  %571 = vmatprep.subr.mxu0 0.0
  %572 = vmatpush1.msra.mxu0 0.0
  %573 = vmatprep.subr.mxu0 0.0
  %574 = vmatpush1.msra.mxu0 0.0
  %575 = vmatprep.subr.mxu0 0.0
  %576 = vmatpush1.msra.mxu0 0.0
  %577 = vmatprep.subr.mxu0 0.0
  %578 = vmatpush1.msra.mxu0 0.0
  %579 = vmatprep.subr.mxu0 0.0
  %580 = vmatpush1.msra.mxu0 0.0
  %581 = vmatprep.subr.mxu0 0.0
  %582 = vmatpush1.msra.mxu0 0.0
  %583 = vmatprep.subr.mxu0 0.0
  %584 = vmatpush1.msra.mxu0 0.0
  %585 = vmatprep.subr.mxu0 0.0
  %586 = vmatpush1.msra.mxu0 0.0
  %587 = vmatprep.subr.mxu0 0.0
  %588 = vmatpush1.msra.mxu0 0.0
  %589 = vmatprep.subr.mxu0 0.0
  %590 = vmatpush1.msra.mxu0 0.0
  %591 = vmatprep.subr.mxu0 0.0
  %592 = vmatpush1.msra.mxu0 0.0
  %593 = vmatprep.subr.mxu0 0.0
  %594 = vmatpush1.msra.mxu0 0.0
  %595 = vmatprep.subr.mxu0 0.0
  %596 = vmatpush1.msra.mxu0 0.0
  %597 = vmatprep.subr.mxu0 0.0
  %598 = vmatpush1.msra.mxu0 0.0
  %599 = vmatprep.subr.mxu0 0.0
  %600 = vmatpush1.msra.mxu0 0.0
  %601 = vmatprep.subr.mxu0 0.0
  %602 = vmatpush1.msra.mxu0 0.0
  %603 = vmatprep.subr.mxu0 0.0
  %604 = vmatpush1.msra.mxu0 0.0
  %605 = vmatprep.subr.mxu0 0.0
  %606 = vmatpush1.msra.mxu0 0.0
  %607 = vmatprep.subr.mxu0 0.0
  %608 = vmatpush1.msra.mxu0 0.0
  %609 = vmatprep.subr.mxu0 0.0
  %610 = vmatpush1.msra.mxu0 0.0
  %611 = vmatprep.subr.mxu0 0.0
  %612 = vmatpush1.msra.mxu0 0.0
  %613 = vmatprep.subr.mxu0 0.0
  %614 = vmatpush1.msra.mxu0 0.0
  %615 = vmatprep.mubr.f32.mxu0 0.0
  %616 = vmatmul.mubr.f32.gmra.mrb[0].mxu0 %v549
  %v617 = vpop.f32.mrb[0].mxu0
  %v618 = vadd.f32 0.0, %v617
  %v619 = vpop.f32.mrb[0].mxu0
  %620 = vdwg.mxu0
  %v622 = vrot.slane %v618, 4
  %v624 = vadd.f32 %v97, %v622
  %v625 = vxor.u32 %v624, 2147483648
  %v626 = vmul.f32 %v625, 1.442695
  %v627 = vpow.pop %v626
  %v628 = vadd.f32 %v627, 1.0
  %v629 = vrcp.pop %v628
  %v630 = vmul.f32 1.0, %v629
  %v631 = vtanh.pop %v624
  %v633 = vrot.slane %v532, 7
  %v635 = vmul.f32 %v630, %v633
  %637 = vrot.lane.b32.xlu0 %v631, 32
  %v638 = vpop.permute.xlu0 %637
  %v640 = vmul.f32 %v630, %v638
  %642 = vrot.lane.b32.xlu0 %v640, 32
  %v643 = vpop.permute.xlu0 %642
  %v645 = vadd.f32 %v635, %v643
  %v646 = vtanh.pop %v645
  %648 = vrot.lane.b32.xlu0 %v646, 32
  %v649 = vpop.permute.xlu0 %648
  %v651 = vmul.f32 %v630, %v649
  %vm652 = vcmp.eq.s32.totalorder %v101, 4
  %v653 = vlaneseq
  %v654 = vshrl.u32 %v653, 7
  %v655 = vsub.s32 4, %v654
  %v656 = vrot.slane %v651, %v655
  %v657 = vsel %vm652, %v656, %v544
  %v659 = vrot.slane %v651, 4
  %660 = vrot.lane.b32.xlu0 %v659, 64
  %v661 = vpop.permute.xlu0 %660
  %v662 = vsel %vm102, %v661, 0
  %664 = vmatprep.subr.mxu0 0.0
  %665 = vmatpush1.msra.mxu0 %v16
  %666 = vmatprep.subr.mxu0 0.0
  %667 = vmatpush1.msra.mxu0 %v17
  %668 = vmatprep.subr.mxu0 0.0
  %669 = vmatpush1.msra.mxu0 %v18
  %670 = vmatprep.subr.mxu0 0.0
  %671 = vmatpush1.msra.mxu0 %v19
  %672 = vmatprep.subr.mxu0 0.0
  %673 = vmatpush1.msra.mxu0 0.0
  %674 = vmatprep.subr.mxu0 0.0
  %675 = vmatpush1.msra.mxu0 0.0
  %676 = vmatprep.subr.mxu0 0.0
  %677 = vmatpush1.msra.mxu0 0.0
  %678 = vmatprep.subr.mxu0 0.0
  %679 = vmatpush1.msra.mxu0 0.0
  %680 = vmatprep.subr.mxu0 0.0
  %681 = vmatpush1.msra.mxu0 0.0
  %682 = vmatprep.subr.mxu0 0.0
  %683 = vmatpush1.msra.mxu0 0.0
  %684 = vmatprep.subr.mxu0 0.0
  %685 = vmatpush1.msra.mxu0 0.0
  %686 = vmatprep.subr.mxu0 0.0
  %687 = vmatpush1.msra.mxu0 0.0
  %688 = vmatprep.subr.mxu0 0.0
  %689 = vmatpush1.msra.mxu0 0.0
  %690 = vmatprep.subr.mxu0 0.0
  %691 = vmatpush1.msra.mxu0 0.0
  %692 = vmatprep.subr.mxu0 0.0
  %693 = vmatpush1.msra.mxu0 0.0
  %694 = vmatprep.subr.mxu0 0.0
  %695 = vmatpush1.msra.mxu0 0.0
  %696 = vmatprep.subr.mxu0 0.0
  %697 = vmatpush1.msra.mxu0 0.0
  %698 = vmatprep.subr.mxu0 0.0
  %699 = vmatpush1.msra.mxu0 0.0
  %700 = vmatprep.subr.mxu0 0.0
  %701 = vmatpush1.msra.mxu0 0.0
  %702 = vmatprep.subr.mxu0 0.0
  %703 = vmatpush1.msra.mxu0 0.0
  %704 = vmatprep.subr.mxu0 0.0
  %705 = vmatpush1.msra.mxu0 0.0
  %706 = vmatprep.subr.mxu0 0.0
  %707 = vmatpush1.msra.mxu0 0.0
  %708 = vmatprep.subr.mxu0 0.0
  %709 = vmatpush1.msra.mxu0 0.0
  %710 = vmatprep.subr.mxu0 0.0
  %711 = vmatpush1.msra.mxu0 0.0
  %712 = vmatprep.subr.mxu0 0.0
  %713 = vmatpush1.msra.mxu0 0.0
  %714 = vmatprep.subr.mxu0 0.0
  %715 = vmatpush1.msra.mxu0 0.0
  %716 = vmatprep.subr.mxu0 0.0
  %717 = vmatpush1.msra.mxu0 0.0
  %718 = vmatprep.subr.mxu0 0.0
  %719 = vmatpush1.msra.mxu0 0.0
  %720 = vmatprep.subr.mxu0 0.0
  %721 = vmatpush1.msra.mxu0 0.0
  %722 = vmatprep.subr.mxu0 0.0
  %723 = vmatpush1.msra.mxu0 0.0
  %724 = vmatprep.subr.mxu0 0.0
  %725 = vmatpush1.msra.mxu0 0.0
  %726 = vmatprep.subr.mxu0 0.0
  %727 = vmatpush1.msra.mxu0 0.0
  %728 = vmatprep.mubr.f32.mxu0 0.0
  %729 = vmatmul.mubr.f32.gmra.mrb[0].mxu0 %v662
  %v730 = vpop.f32.mrb[0].mxu0
  %v731 = vadd.f32 0.0, %v730
  %v732 = vpop.f32.mrb[0].mxu0
  %733 = vdwg.mxu0
  %v735 = vrot.slane %v731, 3
  %v737 = vadd.f32 %v97, %v735
  %v738 = vxor.u32 %v737, 2147483648
  %v739 = vmul.f32 %v738, 1.442695
  %v740 = vpow.pop %v739
  %v741 = vadd.f32 %v740, 1.0
  %v742 = vrcp.pop %v741
  %v743 = vmul.f32 1.0, %v742
  %v744 = vtanh.pop %v737
  %v746 = vrot.slane %v645, 7
  %v748 = vmul.f32 %v743, %v746
  %750 = vrot.lane.b32.xlu0 %v744, 32
  %v751 = vpop.permute.xlu0 %750
  %v753 = vmul.f32 %v743, %v751
  %755 = vrot.lane.b32.xlu0 %v753, 32
  %v756 = vpop.permute.xlu0 %755
  %v758 = vadd.f32 %v748, %v756
  %v759 = vtanh.pop %v758
  %761 = vrot.lane.b32.xlu0 %v759, 32
  %v762 = vpop.permute.xlu0 %761
  %v764 = vmul.f32 %v743, %v762
  %vm765 = vcmp.eq.s32.totalorder %v101, 5
  %v766 = vlaneseq
  %v767 = vshrl.u32 %v766, 7
  %v768 = vsub.s32 5, %v767
  %v769 = vrot.slane %v764, %v768
  %v770 = vsel %vm765, %v769, %v657
  %v772 = vrot.slane %v764, 5
  %773 = vrot.lane.b32.xlu0 %v772, 64
  %v774 = vpop.permute.xlu0 %773
  %v775 = vsel %vm102, %v774, 0
  %777 = vmatprep.subr.mxu0 0.0
  %778 = vmatpush1.msra.mxu0 %v16
  %779 = vmatprep.subr.mxu0 0.0
  %780 = vmatpush1.msra.mxu0 %v17
  %781 = vmatprep.subr.mxu0 0.0
  %782 = vmatpush1.msra.mxu0 %v18
  %783 = vmatprep.subr.mxu0 0.0
  %784 = vmatpush1.msra.mxu0 %v19
  %785 = vmatprep.subr.mxu0 0.0
  %786 = vmatpush1.msra.mxu0 0.0
  %787 = vmatprep.subr.mxu0 0.0
  %788 = vmatpush1.msra.mxu0 0.0
  %789 = vmatprep.subr.mxu0 0.0
  %790 = vmatpush1.msra.mxu0 0.0
  %791 = vmatprep.subr.mxu0 0.0
  %792 = vmatpush1.msra.mxu0 0.0
  %793 = vmatprep.subr.mxu0 0.0
  %794 = vmatpush1.msra.mxu0 0.0
  %795 = vmatprep.subr.mxu0 0.0
  %796 = vmatpush1.msra.mxu0 0.0
  %797 = vmatprep.subr.mxu0 0.0
  %798 = vmatpush1.msra.mxu0 0.0
  %799 = vmatprep.subr.mxu0 0.0
  %800 = vmatpush1.msra.mxu0 0.0
  %801 = vmatprep.subr.mxu0 0.0
  %802 = vmatpush1.msra.mxu0 0.0
  %803 = vmatprep.subr.mxu0 0.0
  %804 = vmatpush1.msra.mxu0 0.0
  %805 = vmatprep.subr.mxu0 0.0
  %806 = vmatpush1.msra.mxu0 0.0
  %807 = vmatprep.subr.mxu0 0.0
  %808 = vmatpush1.msra.mxu0 0.0
  %809 = vmatprep.subr.mxu0 0.0
  %810 = vmatpush1.msra.mxu0 0.0
  %811 = vmatprep.subr.mxu0 0.0
  %812 = vmatpush1.msra.mxu0 0.0
  %813 = vmatprep.subr.mxu0 0.0
  %814 = vmatpush1.msra.mxu0 0.0
  %815 = vmatprep.subr.mxu0 0.0
  %816 = vmatpush1.msra.mxu0 0.0
  %817 = vmatprep.subr.mxu0 0.0
  %818 = vmatpush1.msra.mxu0 0.0
  %819 = vmatprep.subr.mxu0 0.0
  %820 = vmatpush1.msra.mxu0 0.0
  %821 = vmatprep.subr.mxu0 0.0
  %822 = vmatpush1.msra.mxu0 0.0
  %823 = vmatprep.subr.mxu0 0.0
  %824 = vmatpush1.msra.mxu0 0.0
  %825 = vmatprep.subr.mxu0 0.0
  %826 = vmatpush1.msra.mxu0 0.0
  %827 = vmatprep.subr.mxu0 0.0
  %828 = vmatpush1.msra.mxu0 0.0
  %829 = vmatprep.subr.mxu0 0.0
  %830 = vmatpush1.msra.mxu0 0.0
  %831 = vmatprep.subr.mxu0 0.0
  %832 = vmatpush1.msra.mxu0 0.0
  %833 = vmatprep.subr.mxu0 0.0
  %834 = vmatpush1.msra.mxu0 0.0
  %835 = vmatprep.subr.mxu0 0.0
  %836 = vmatpush1.msra.mxu0 0.0
  %837 = vmatprep.subr.mxu0 0.0
  %838 = vmatpush1.msra.mxu0 0.0
  %839 = vmatprep.subr.mxu0 0.0
  %840 = vmatpush1.msra.mxu0 0.0
  %841 = vmatprep.mubr.f32.mxu0 0.0
  %842 = vmatmul.mubr.f32.gmra.mrb[0].mxu0 %v775
  %v843 = vpop.f32.mrb[0].mxu0
  %v844 = vadd.f32 0.0, %v843
  %v845 = vpop.f32.mrb[0].mxu0
  %846 = vdwg.mxu0
  %v848 = vrot.slane %v844, 2
  %v850 = vadd.f32 %v97, %v848
  %v851 = vxor.u32 %v850, 2147483648
  %v852 = vmul.f32 %v851, 1.442695
  %v853 = vpow.pop %v852
  %v854 = vadd.f32 %v853, 1.0
  %v855 = vrcp.pop %v854
  %v856 = vmul.f32 1.0, %v855
  %v857 = vtanh.pop %v850
  %v859 = vrot.slane %v758, 7
  %v861 = vmul.f32 %v856, %v859
  %863 = vrot.lane.b32.xlu0 %v857, 32
  %v864 = vpop.permute.xlu0 %863
  %v866 = vmul.f32 %v856, %v864
  %868 = vrot.lane.b32.xlu0 %v866, 32
  %v869 = vpop.permute.xlu0 %868
  %v871 = vadd.f32 %v861, %v869
  %v872 = vtanh.pop %v871
  %874 = vrot.lane.b32.xlu0 %v872, 32
  %v875 = vpop.permute.xlu0 %874
  %v877 = vmul.f32 %v856, %v875
  %vm878 = vcmp.eq.s32.totalorder %v101, 6
  %v879 = vlaneseq
  %v880 = vshrl.u32 %v879, 7
  %v881 = vsub.s32 6, %v880
  %v882 = vrot.slane %v877, %v881
  %v883 = vsel %vm878, %v882, %v770
  %v885 = vrot.slane %v877, 6
  %886 = vrot.lane.b32.xlu0 %v885, 64
  %v887 = vpop.permute.xlu0 %886
  %v888 = vsel %vm102, %v887, 0
  %890 = vmatprep.subr.mxu0 0.0
  %891 = vmatpush1.msra.mxu0 %v16
  %892 = vmatprep.subr.mxu0 0.0
  %893 = vmatpush1.msra.mxu0 %v17
  %894 = vmatprep.subr.mxu0 0.0
  %895 = vmatpush1.msra.mxu0 %v18
  %896 = vmatprep.subr.mxu0 0.0
  %897 = vmatpush1.msra.mxu0 %v19
  %898 = vmatprep.subr.mxu0 0.0
  %899 = vmatpush1.msra.mxu0 0.0
  %900 = vmatprep.subr.mxu0 0.0
  %901 = vmatpush1.msra.mxu0 0.0
  %902 = vmatprep.subr.mxu0 0.0
  %903 = vmatpush1.msra.mxu0 0.0
  %904 = vmatprep.subr.mxu0 0.0
  %905 = vmatpush1.msra.mxu0 0.0
  %906 = vmatprep.subr.mxu0 0.0
  %907 = vmatpush1.msra.mxu0 0.0
  %908 = vmatprep.subr.mxu0 0.0
  %909 = vmatpush1.msra.mxu0 0.0
  %910 = vmatprep.subr.mxu0 0.0
  %911 = vmatpush1.msra.mxu0 0.0
  %912 = vmatprep.subr.mxu0 0.0
  %913 = vmatpush1.msra.mxu0 0.0
  %914 = vmatprep.subr.mxu0 0.0
  %915 = vmatpush1.msra.mxu0 0.0
  %916 = vmatprep.subr.mxu0 0.0
  %917 = vmatpush1.msra.mxu0 0.0
  %918 = vmatprep.subr.mxu0 0.0
  %919 = vmatpush1.msra.mxu0 0.0
  %920 = vmatprep.subr.mxu0 0.0
  %921 = vmatpush1.msra.mxu0 0.0
  %922 = vmatprep.subr.mxu0 0.0
  %923 = vmatpush1.msra.mxu0 0.0
  %924 = vmatprep.subr.mxu0 0.0
  %925 = vmatpush1.msra.mxu0 0.0
  %926 = vmatprep.subr.mxu0 0.0
  %927 = vmatpush1.msra.mxu0 0.0
  %928 = vmatprep.subr.mxu0 0.0
  %929 = vmatpush1.msra.mxu0 0.0
  %930 = vmatprep.subr.mxu0 0.0
  %931 = vmatpush1.msra.mxu0 0.0
  %932 = vmatprep.subr.mxu0 0.0
  %933 = vmatpush1.msra.mxu0 0.0
  %934 = vmatprep.subr.mxu0 0.0
  %935 = vmatpush1.msra.mxu0 0.0
  %936 = vmatprep.subr.mxu0 0.0
  %937 = vmatpush1.msra.mxu0 0.0
  %938 = vmatprep.subr.mxu0 0.0
  %939 = vmatpush1.msra.mxu0 0.0
  %940 = vmatprep.subr.mxu0 0.0
  %941 = vmatpush1.msra.mxu0 0.0
  %942 = vmatprep.subr.mxu0 0.0
  %943 = vmatpush1.msra.mxu0 0.0
  %944 = vmatprep.subr.mxu0 0.0
  %945 = vmatpush1.msra.mxu0 0.0
  %946 = vmatprep.subr.mxu0 0.0
  %947 = vmatpush1.msra.mxu0 0.0
  %948 = vmatprep.subr.mxu0 0.0
  %949 = vmatpush1.msra.mxu0 0.0
  %950 = vmatprep.subr.mxu0 0.0
  %951 = vmatpush1.msra.mxu0 0.0
  %952 = vmatprep.subr.mxu0 0.0
  %953 = vmatpush1.msra.mxu0 0.0
  %954 = vmatprep.mubr.f32.mxu0 0.0
  %955 = vmatmul.mubr.f32.gmra.mrb[0].mxu0 %v888
  %v956 = vpop.f32.mrb[0].mxu0
  %v957 = vadd.f32 0.0, %v956
  %v958 = vpop.f32.mrb[0].mxu0
  %959 = vdwg.mxu0
  %v961 = vrot.slane %v957, 1
  %v963 = vadd.f32 %v97, %v961
  %v964 = vxor.u32 %v963, 2147483648
  %v965 = vmul.f32 %v964, 1.442695
  %v966 = vpow.pop %v965
  %v967 = vadd.f32 %v966, 1.0
  %v968 = vrcp.pop %v967
  %v969 = vmul.f32 1.0, %v968
  %v970 = vtanh.pop %v963
  %v972 = vrot.slane %v871, 7
  %v974 = vmul.f32 %v969, %v972
  %976 = vrot.lane.b32.xlu0 %v970, 32
  %v977 = vpop.permute.xlu0 %976
  %v979 = vmul.f32 %v969, %v977
  %981 = vrot.lane.b32.xlu0 %v979, 32
  %v982 = vpop.permute.xlu0 %981
  %v984 = vadd.f32 %v974, %v982
  %v985 = vtanh.pop %v984
  %987 = vrot.lane.b32.xlu0 %v985, 32
  %v988 = vpop.permute.xlu0 %987
  %v990 = vmul.f32 %v969, %v988
  %vm991 = vcmp.eq.s32.totalorder %v101, 7
  %v992 = vlaneseq
  %v993 = vshrl.u32 %v992, 7
  %v994 = vsub.s32 7, %v993
  %v995 = vrot.slane %v990, %v994
  %v996 = vsel %vm991, %v995, %v883
  %v997 = vld [vmem:[%s2] sm:$0xff]
  %v998 = vld [vmem:[%s2 + $0x8] sm:$0xff]
  %v999 = vld [vmem:[%s2 + $0x10] sm:$0xff]
  %v1000 = vld [vmem:[%s2 + $0x18] sm:$0xff]
  %v1001 = vld [vmem:[%s2 + $0x20] sm:$0x1]
  %v1002 = vld [vmem:[%s2 + $0x28] sm:$0x1]
  %v1003 = vld [vmem:[%s2 + $0x30] sm:$0xff]
  %v1004 = vld [vmem:[%s2 + $0x38] sm:$0xff]
  %v1005 = vld [vmem:[%s2 + $0x40] sm:$0xff]
  %v1006 = vld [vmem:[%s2 + $0x48] sm:$0xff]
  %v1007 = vld [vmem:[%s2 + $0x50] sm:$0xff]
  %v1008 = vld [vmem:[%s2 + $0x58] sm:$0xff]
  %v1009 = vld [vmem:[%s2 + $0x60] sm:$0xff]
  %v1010 = vld [vmem:[%s2 + $0x68] sm:$0xff]
  %v1011 = vld [vmem:[%s2 + $0x70] sm:$0x1]
  %v1012 = vld [vmem:[%s2 + $0x78] sm:$0xf]
  %v1013 = vld [vmem:[%s2 + $0x80] sm:$0xf]
  %v1014 = vlaneseq
  %v1015 = vshrl.u32 %v1014, 7
  %v1016 = vsub.s32 0, %v1015
  %v1017 = vrot.slane %v1001, %v1016
  %1019 = vrot.lane.b32.xlu0 %v996, 64
  %v1020 = vpop.permute.xlu0 %1019
  %v1021 = vsel %vm102, %v1020, 0
  %1023 = vmatprep.subr.mxu0 0.0
  %1024 = vmatpush1.msra.mxu0 %v997
  %1025 = vmatprep.subr.mxu0 0.0
  %1026 = vmatpush1.msra.mxu0 %v998
  %1027 = vmatprep.subr.mxu0 0.0
  %1028 = vmatpush1.msra.mxu0 %v999
  %1029 = vmatprep.subr.mxu0 0.0
  %1030 = vmatpush1.msra.mxu0 %v1000
  %1031 = vmatprep.subr.mxu0 0.0
  %1032 = vmatpush1.msra.mxu0 0.0
  %1033 = vmatprep.subr.mxu0 0.0
  %1034 = vmatpush1.msra.mxu0 0.0
  %1035 = vmatprep.subr.mxu0 0.0
  %1036 = vmatpush1.msra.mxu0 0.0
  %1037 = vmatprep.subr.mxu0 0.0
  %1038 = vmatpush1.msra.mxu0 0.0
  %1039 = vmatprep.subr.mxu0 0.0
  %1040 = vmatpush1.msra.mxu0 0.0
  %1041 = vmatprep.subr.mxu0 0.0
  %1042 = vmatpush1.msra.mxu0 0.0
  %1043 = vmatprep.subr.mxu0 0.0
  %1044 = vmatpush1.msra.mxu0 0.0
  %1045 = vmatprep.subr.mxu0 0.0
  %1046 = vmatpush1.msra.mxu0 0.0
  %1047 = vmatprep.subr.mxu0 0.0
  %1048 = vmatpush1.msra.mxu0 0.0
  %1049 = vmatprep.subr.mxu0 0.0
  %1050 = vmatpush1.msra.mxu0 0.0
  %1051 = vmatprep.subr.mxu0 0.0
  %1052 = vmatpush1.msra.mxu0 0.0
  %1053 = vmatprep.subr.mxu0 0.0
  %1054 = vmatpush1.msra.mxu0 0.0
  %1055 = vmatprep.subr.mxu0 0.0
  %1056 = vmatpush1.msra.mxu0 0.0
  %1057 = vmatprep.subr.mxu0 0.0
  %1058 = vmatpush1.msra.mxu0 0.0
  %1059 = vmatprep.subr.mxu0 0.0
  %1060 = vmatpush1.msra.mxu0 0.0
  %1061 = vmatprep.subr.mxu0 0.0
  %1062 = vmatpush1.msra.mxu0 0.0
  %1063 = vmatprep.subr.mxu0 0.0
  %1064 = vmatpush1.msra.mxu0 0.0
  %1065 = vmatprep.subr.mxu0 0.0
  %1066 = vmatpush1.msra.mxu0 0.0
  %1067 = vmatprep.subr.mxu0 0.0
  %1068 = vmatpush1.msra.mxu0 0.0
  %1069 = vmatprep.subr.mxu0 0.0
  %1070 = vmatpush1.msra.mxu0 0.0
  %1071 = vmatprep.subr.mxu0 0.0
  %1072 = vmatpush1.msra.mxu0 0.0
  %1073 = vmatprep.subr.mxu0 0.0
  %1074 = vmatpush1.msra.mxu0 0.0
  %1075 = vmatprep.subr.mxu0 0.0
  %1076 = vmatpush1.msra.mxu0 0.0
  %1077 = vmatprep.subr.mxu0 0.0
  %1078 = vmatpush1.msra.mxu0 0.0
  %1079 = vmatprep.subr.mxu0 0.0
  %1080 = vmatpush1.msra.mxu0 0.0
  %1081 = vmatprep.subr.mxu0 0.0
  %1082 = vmatpush1.msra.mxu0 0.0
  %1083 = vmatprep.subr.mxu0 0.0
  %1084 = vmatpush1.msra.mxu0 0.0
  %1085 = vmatprep.subr.mxu0 0.0
  %1086 = vmatpush1.msra.mxu0 0.0
  %1087 = vmatprep.mubr.f32.mxu0 0.0
  %1088 = vmatmul.mubr.f32.gmra.mrb[0].mxu0 %v1021
  %v1089 = vpop.f32.mrb[0].mxu0
  %v1090 = vadd.f32 %v1017, %v1089
  %v1091 = vpop.f32.mrb[0].mxu0
  %1092 = vdwg.mxu0
  %v1093 = vtanh.pop %v1090
  %v1094 = vlaneseq
  %v1095 = vshrl.u32 %v1094, 7
  %v1096 = vsub.s32 0, %v1095
  %v1097 = vrot.slane %v1002, %v1096
  %v1098 = vmul.f32 %v1093, %v1097
  %v1099 = vsel %vm102, %v1098, 0.0
  %1100 = vadd.xlane.f32.xlu0 %v1099
  %v1101 = vpop.xlane.xlu0 %1100
  %v1102 = vrot.slane %v1101, 4
  %v1103 = vmax.f32 %v1101, %v1102
  %v1104 = vrot.slane %v1103, 2
  %v1105 = vmax.f32 %v1103, %v1104
  %v1106 = vrot.slane %v1105, 1
  %v1107 = vmax.f32 %v1105, %v1106
  %v1108 = vsub.f32 %v1101, %v1107
  %v1109 = vmul.f32 %v1108, 1.442695
  %v1110 = vpow.pop %v1109
  %v1111 = vrot.slane %v1110, 4
  %v1112 = vadd.f32 %v1110, %v1111
  %v1113 = vrot.slane %v1112, 2
  %v1114 = vadd.f32 %v1112, %v1113
  %v1115 = vrot.slane %v1114, 1
  %v1116 = vadd.f32 %v1114, %v1115
  %v1117 = vrcp.pop %v1116
  %v1118 = vmul.f32 %v1110, %v1117
  %v1119 = vmul.f32 %v1118, %v996
  %vm1120 = vcmask 785920
  %v1121 = vsel %vm1120, %v1119, 0.0
  %v1122 = vrot.slane %v1121, 4
  %v1123 = vadd.f32 %v1121, %v1122
  %v1124 = vrot.slane %v1123, 2
  %v1125 = vadd.f32 %v1123, %v1124
  %v1126 = vrot.slane %v1125, 1
  %v1127 = vadd.f32 %v1125, %v1126
  %1129 = vrot.lane.b32.xlu0 %v1127, 64
  %v1130 = vpop.permute.xlu0 %1129
  %v1133 = vrot.slane %v990, 7
  %1134 = vrot.lane.b32.xlu0 %v1133, 96
  %v1135 = vpop.permute.xlu0 %1134
  %v1137 = vsel %vm102, %v1130, %v1135
  %vm1138 = vcmask 523264
  %v1140 = vsel %vm1138, %v1137, 0
  %1142 = vmatprep.subr.mxu0 0.0
  %1143 = vmatpush1.msra.mxu0 %v1003
  %1144 = vmatprep.subr.mxu0 0.0
  %1145 = vmatpush1.msra.mxu0 %v1004
  %1146 = vmatprep.subr.mxu0 0.0
  %1147 = vmatpush1.msra.mxu0 %v1005
  %1148 = vmatprep.subr.mxu0 0.0
  %1149 = vmatpush1.msra.mxu0 %v1006
  %1150 = vmatprep.subr.mxu0 0.0
  %1151 = vmatpush1.msra.mxu0 %v1007
  %1152 = vmatprep.subr.mxu0 0.0
  %1153 = vmatpush1.msra.mxu0 %v1008
  %1154 = vmatprep.subr.mxu0 0.0
  %1155 = vmatpush1.msra.mxu0 %v1009
  %1156 = vmatprep.subr.mxu0 0.0
  %1157 = vmatpush1.msra.mxu0 %v1010
  %1158 = vmatprep.subr.mxu0 0.0
  %1159 = vmatpush1.msra.mxu0 0.0
  %1160 = vmatprep.subr.mxu0 0.0
  %1161 = vmatpush1.msra.mxu0 0.0
  %1162 = vmatprep.subr.mxu0 0.0
  %1163 = vmatpush1.msra.mxu0 0.0
  %1164 = vmatprep.subr.mxu0 0.0
  %1165 = vmatpush1.msra.mxu0 0.0
  %1166 = vmatprep.subr.mxu0 0.0
  %1167 = vmatpush1.msra.mxu0 0.0
  %1168 = vmatprep.subr.mxu0 0.0
  %1169 = vmatpush1.msra.mxu0 0.0
  %1170 = vmatprep.subr.mxu0 0.0
  %1171 = vmatpush1.msra.mxu0 0.0
  %1172 = vmatprep.subr.mxu0 0.0
  %1173 = vmatpush1.msra.mxu0 0.0
  %1174 = vmatprep.subr.mxu0 0.0
  %1175 = vmatpush1.msra.mxu0 0.0
  %1176 = vmatprep.subr.mxu0 0.0
  %1177 = vmatpush1.msra.mxu0 0.0
  %1178 = vmatprep.subr.mxu0 0.0
  %1179 = vmatpush1.msra.mxu0 0.0
  %1180 = vmatprep.subr.mxu0 0.0
  %1181 = vmatpush1.msra.mxu0 0.0
  %1182 = vmatprep.subr.mxu0 0.0
  %1183 = vmatpush1.msra.mxu0 0.0
  %1184 = vmatprep.subr.mxu0 0.0
  %1185 = vmatpush1.msra.mxu0 0.0
  %1186 = vmatprep.subr.mxu0 0.0
  %1187 = vmatpush1.msra.mxu0 0.0
  %1188 = vmatprep.subr.mxu0 0.0
  %1189 = vmatpush1.msra.mxu0 0.0
  %1190 = vmatprep.subr.mxu0 0.0
  %1191 = vmatpush1.msra.mxu0 0.0
  %1192 = vmatprep.subr.mxu0 0.0
  %1193 = vmatpush1.msra.mxu0 0.0
  %1194 = vmatprep.subr.mxu0 0.0
  %1195 = vmatpush1.msra.mxu0 0.0
  %1196 = vmatprep.subr.mxu0 0.0
  %1197 = vmatpush1.msra.mxu0 0.0
  %1198 = vmatprep.subr.mxu0 0.0
  %1199 = vmatpush1.msra.mxu0 0.0
  %1200 = vmatprep.subr.mxu0 0.0
  %1201 = vmatpush1.msra.mxu0 0.0
  %1202 = vmatprep.subr.mxu0 0.0
  %1203 = vmatpush1.msra.mxu0 0.0
  %1204 = vmatprep.subr.mxu0 0.0
  %1205 = vmatpush1.msra.mxu0 0.0
  %1206 = vmatprep.mubr.f32.mxu0 0.0
  %1207 = vmatmul.mubr.f32.gmra.mrb[0].mxu0 %v1140
  %v1208 = vpop.f32.mrb[0].mxu0
  %v1209 = vadd.f32 %v1011, %v1208
  %v1210 = vpop.f32.mrb[0].mxu0
  %1211 = vdwg.mxu0
  %v1212 = vtanh.pop %v1209
  %v1213 = vlaneseq
  %v1214 = vshrl.u32 %v1213, 7
  %v1215 = vsub.s32 0, %v1214
  %v1216 = vrot.slane %v1212, %v1215
  %v1217 = vmul.f32 %v1216, %v1012
  %vm1218 = vcmask 257024
  %v1219 = vsel %vm1218, %v1217, 0.0
  %1220 = vadd.xlane.f32.xlu0 %v1219
  %v1221 = vpop.xlane.xlu0 %1220
  %v1222 = vadd.f32 %v1221, %v1013
  %vm1223 = vcmask 3072
  %1224 = vst.msk [vmem:[%s3] sm:$0xf] %vm1223, %v1222
  // Predicated region
  $region14: #{tpu_custom_call.1} parent=0 // pred_check
    _
  $region15: #{tpu_custom_call.1} parent=0 // pred_check_branch
    %1226 = sbr.rel (0) target = $region17
  $region16: #{tpu_custom_call.1} parent=0 // pred_region
    _
  $region17: #{tpu_custom_call.1} parent=0 // pred_fallthru
    _
  // Predicated region
  $region18: #{tpu_custom_call.1} parent=0 // pred_check
    _
  $region19: #{tpu_custom_call.1} parent=0 // pred_check_branch
    %1228 = sbr.rel (0) target = $region21
  $region20: #{tpu_custom_call.1} parent=0 // pred_region
    _
  $region21: #{tpu_custom_call.1} parent=0 // pred_fallthru
    _

</llo_original>
